<compile_context>
chip_gen: v7x
topology: tpu7x:2x2x1
jax: 0.10.0
libtpu: 0.0.40
codegen_flags: <defaults>
</compile_context>

<pallas_src>
import jax
import jax.numpy as jnp
from jax.experimental import pallas as pl
from jax.experimental.pallas import tpu as pltpu


def _fusion_att_kernel(z_ref, w1_ref, b1_ref, w2_ref, out_ref, beta_ref):
    # z_ref:   (V, TN, D)  current tile of rows, all views
    # w1_ref:  (D, H)
    # b1_ref:  (1, H)
    # w2_ref:  (1, H)      second linear's weight as a row (no bias)
    # out_ref: (TN, D)
    # beta_ref:(V, TN)     lane-dense beta output
    V, TN, D = z_ref.shape

    z = z_ref[...].astype(jnp.float32)                 # (V, TN, D)
    w1 = w1_ref[...]                                   # (D, H)
    b1 = b1_ref[...]                                   # (1, H)
    w2 = w2_ref[...]                                   # (1, H)

    # --- attention scores: one batched MXU matmul for all views -------------
    zf = z.reshape(V * TN, D)                          # free collapse (last dim kept)
    h = jnp.dot(zf, w1, preferred_element_type=jnp.float32) + b1   # (V*TN, H)
    h = jnp.maximum(h, 0.0)

    # H -> 1 projection as VPU multiply + lane reduce (avoid width-1 MXU op).
    s = jnp.sum(h * w2, axis=-1, keepdims=True)        # (V*TN, 1)
    s = s.reshape(V, TN, 1)                            # per-view score columns

    # --- softmax over the view axis, unrolled over V (pure elementwise) -----
    cols = [s[v] for v in range(V)]                    # each (TN, 1)
    m = cols[0]
    for v in range(1, V):
        m = jnp.maximum(m, cols[v])
    exps = [jnp.exp(c - m) for c in cols]
    denom = exps[0]
    for v in range(1, V):
        denom = denom + exps[v]
    inv = pl.reciprocal(denom, approx=True)            # EUP slot (cheap)
    inv = inv * (2.0 - denom * inv)                    # 1 Newton step -> ~f32 accuracy
    betas = [e * inv for e in exps]                    # each (TN, 1)

    # --- weighted sum of views ----------------------------------------------
    acc = betas[0] * z[0]
    for v in range(1, V):
        acc = acc + betas[v] * z[v]
    out_ref[...] = acc.astype(out_ref.dtype)

    # --- lane-dense beta store: (V, TN), TN on the lane axis -----------------
    beta_rows = [b.reshape(1, TN) for b in betas]      # tiny XLU relayouts
    beta_ref[...] = jnp.concatenate(beta_rows, axis=0).astype(beta_ref.dtype)


def fusion_layer_att(features, w1, b1, w2, *, tile_n=1024, cast_z_bf16=False):
    """features: list of V arrays, each [N, D]. Returns (out [N,D], beta [N,V,1])."""
    num_views = len(features)
    N, D = features[0].shape
    H = w1.shape[1]
    out_dtype = features[0].dtype

    z = jnp.stack(features, axis=0)                    # (V, N, D) view-major
    if cast_z_bf16:
        # Optional: halve the dominant HBM read traffic (kernel accumulates in f32).
        z = z.astype(jnp.bfloat16)

    # tile_n must be a multiple of 128 (it is the lane dim of the beta block);
    # pad N up to a multiple of tile_n so every grid step sees a full tile.
    tile_n = max(128, (int(tile_n) // 128) * 128)
    tile_n = min(tile_n, pl.cdiv(N, 128) * 128)
    n_pad = pl.cdiv(N, tile_n) * tile_n
    if n_pad != N:
        z = jnp.pad(z, ((0, 0), (0, n_pad - N), (0, 0)))
    grid_n = n_pad // tile_n

    w1_f = w1.astype(jnp.float32)                      # (D, H)
    b1_row = b1.reshape(1, H).astype(jnp.float32)      # (1, H)
    w2_row = w2.reshape(1, H).astype(jnp.float32)      # (1, H)

    out, beta_vn = pl.pallas_call(
        _fusion_att_kernel,
        out_shape=(
            jax.ShapeDtypeStruct((n_pad, D), out_dtype),
            jax.ShapeDtypeStruct((num_views, n_pad), jnp.float32),
        ),
        grid_spec=pltpu.PrefetchScalarGridSpec(
            num_scalar_prefetch=0,
            grid=(grid_n,),
            in_specs=[
                pl.BlockSpec((num_views, tile_n, D), lambda i: (0, i, 0)),
                pl.BlockSpec((D, H), lambda i: (0, 0)),
                pl.BlockSpec((1, H), lambda i: (0, 0)),
                pl.BlockSpec((1, H), lambda i: (0, 0)),
            ],
            out_specs=[
                pl.BlockSpec((tile_n, D), lambda i: (i, 0)),
                pl.BlockSpec((num_views, tile_n), lambda i: (0, i)),
            ],
        ),
        compiler_params=pltpu.CompilerParams(
            dimension_semantics=("parallel",)),
    )(z, w1_f, b1_row, w2_row)

    out = out[:N]
    beta = beta_vn[:, :N].T.reshape(N, num_views, 1)   # match torch [N, V, 1]
    return out, beta


def _reference(features, w1, b1, w2):
    z = jnp.stack(features, axis=1)                    # [N, V, D]
    h = jax.nn.relu(jnp.einsum("nvd,dh->nvh", z, w1) + b1)
    w = jnp.einsum("nvh,ho->nvo", h, w2.reshape(w2.shape[0], 1))   # [N, V, 1]
    beta = jax.nn.softmax(w, axis=1)
    out = (beta * z).sum(axis=1)
    return out, beta


if __name__ == "__main__":
    key = jax.random.PRNGKey(0)
    num_views = 2
    hidden_dim = 32   # FusionLayer hidden_dim (D)
    att_hidden = 64   # Attention hidden_size (H)
    N = 520           # number of nodes / rows (not a multiple of 128 -> exercises padding)

    k_feats, k_w1, k_b1, k_w2 = jax.random.split(key, 4)

    feats = [
        jax.random.normal(jax.random.fold_in(k_feats, v), (N, hidden_dim),
                          dtype=jnp.float32)
        for v in range(num_views)
    ]
    w1 = jax.random.normal(k_w1, (hidden_dim, att_hidden), jnp.float32) * 0.1
    b1 = jax.random.normal(k_b1, (att_hidden,), jnp.float32) * 0.1
    w2 = jax.random.normal(k_w2, (att_hidden,), jnp.float32) * 0.1

    # tile_n=128 -> padded N=640, grid=(5,): multiple pipelined grid steps.
    out, beta = fusion_layer_att(feats, w1, b1, w2, tile_n=128)
    out = jax.block_until_ready(out)
    beta = jax.block_until_ready(beta)

    ref_out, ref_beta = _reference(feats, w1, b1, w2)
    assert out.shape == (N, hidden_dim)
    assert beta.shape == (N, num_views, 1)
    assert jnp.allclose(out, ref_out, atol=1e-4, rtol=1e-4), "combined feature mismatch"
    assert jnp.allclose(beta, ref_beta, atol=1e-4, rtol=1e-4), "beta mismatch"

    print("KERNEL_OK")
</pallas_src>

<mosaic_0001>
module attributes {stable_mosaic.version = 11 : i64} {
  func.func @_fusion_att_kernel(%arg0: i32, %arg1: memref<2x128x32xf32, #tpu.memory_space<vmem>>, %arg2: memref<32x64xf32, #tpu.memory_space<vmem>>, %arg3: memref<1x64xf32, #tpu.memory_space<vmem>>, %arg4: memref<1x64xf32, #tpu.memory_space<vmem>>, %arg5: memref<128x32xf32, #tpu.memory_space<vmem>>, %arg6: memref<2x128xf32, #tpu.memory_space<vmem>>) attributes {dimension_semantics = [#tpu.dimension_semantics<parallel>], iteration_bounds = array<i64: 5>, scalar_prefetch = 0 : i64, scratch_operands = 0 : i64, tpu.core_type = #tpu.core_type<tc>, window_params = [{transform_indices = @transform_0, window_bounds = array<i64: 2, 128, 32>}, {pipeline_mode = #tpu.pipeline_mode<synchronous>, transform_indices = @transform_1, window_bounds = array<i64: 32, 64>}, {pipeline_mode = #tpu.pipeline_mode<synchronous>, transform_indices = @transform_2, window_bounds = array<i64: 1, 64>}, {pipeline_mode = #tpu.pipeline_mode<synchronous>, transform_indices = @transform_3, window_bounds = array<i64: 1, 64>}, {transform_indices = @transform_4, window_bounds = array<i64: 128, 32>}, {transform_indices = @transform_5, window_bounds = array<i64: 2, 128>}]} {
    %c0 = arith.constant 0 : index
    %c0_0 = arith.constant 0 : index
    %c0_1 = arith.constant 0 : index
    %0 = vector.load %arg1[%c0, %c0_0, %c0_1] : memref<2x128x32xf32, #tpu.memory_space<vmem>>, vector<2x128x32xf32>
    %c0_2 = arith.constant 0 : index
    %c0_3 = arith.constant 0 : index
    %1 = vector.load %arg2[%c0_2, %c0_3] : memref<32x64xf32, #tpu.memory_space<vmem>>, vector<32x64xf32>
    %c0_4 = arith.constant 0 : index
    %c0_5 = arith.constant 0 : index
    %2 = vector.load %arg3[%c0_4, %c0_5] : memref<1x64xf32, #tpu.memory_space<vmem>>, vector<1x64xf32>
    %c0_6 = arith.constant 0 : index
    %c0_7 = arith.constant 0 : index
    %3 = vector.load %arg4[%c0_6, %c0_7] : memref<1x64xf32, #tpu.memory_space<vmem>>, vector<1x64xf32>
    %4 = vector.shape_cast %0 : vector<2x128x32xf32> to vector<256x32xf32>
    %cst = arith.constant dense<0.000000e+00> : vector<256x64xf32>
    %5 = tpu.matmul %4, %1, %cst {dimension_numbers = #tpu.dot_dimension_numbers<[1], [0], [0], [1], [0, 0, 1, 1], [], []>} : vector<256x32xf32>, vector<32x64xf32>, vector<256x64xf32> -> vector<256x64xf32>
    %6 = vector.broadcast %2 : vector<1x64xf32> to vector<256x64xf32>
    %7 = arith.addf %5, %6 : vector<256x64xf32>
    %cst_8 = arith.constant 0.000000e+00 : f32
    %8 = vector.broadcast %cst_8 : f32 to vector<256x64xf32>
    %9 = arith.maximumf %7, %8 : vector<256x64xf32>
    %10 = vector.broadcast %3 : vector<1x64xf32> to vector<256x64xf32>
    %11 = arith.mulf %9, %10 : vector<256x64xf32>
    %cst_9 = arith.constant dense<0.000000e+00> : vector<256xf32>
    %12 = vector.multi_reduction <add>, %11, %cst_9 [1] : vector<256x64xf32> to vector<256xf32>
    %13 = vector.shape_cast %12 : vector<256xf32> to vector<256x1xf32>
    %14 = vector.shape_cast %13 : vector<256x1xf32> to vector<2x128x1xf32>
    %15 = vector.extract_strided_slice %14 {offsets = [0, 0, 0], sizes = [1, 128, 1], strides = [1, 1, 1]} : vector<2x128x1xf32> to vector<1x128x1xf32>
    %16 = vector.shape_cast %15 : vector<1x128x1xf32> to vector<128x1xf32>
    %17 = vector.extract_strided_slice %14 {offsets = [1, 0, 0], sizes = [1, 128, 1], strides = [1, 1, 1]} : vector<2x128x1xf32> to vector<1x128x1xf32>
    %18 = vector.shape_cast %17 : vector<1x128x1xf32> to vector<128x1xf32>
    %19 = arith.maximumf %16, %18 : vector<128x1xf32>
    %20 = arith.subf %16, %19 : vector<128x1xf32>
    %21 = math.exp %20 : vector<128x1xf32>
    %22 = arith.subf %18, %19 : vector<128x1xf32>
    %23 = math.exp %22 : vector<128x1xf32>
    %24 = arith.addf %21, %23 : vector<128x1xf32>
    %25 = tpu.reciprocal %24 {approx = true} : vector<128x1xf32> -> vector<128x1xf32>
    %26 = arith.mulf %24, %25 : vector<128x1xf32>
    %cst_10 = arith.constant 2.000000e+00 : f32
    %27 = vector.broadcast %cst_10 : f32 to vector<128x1xf32>
    %28 = arith.subf %27, %26 : vector<128x1xf32>
    %29 = arith.mulf %25, %28 : vector<128x1xf32>
    %30 = arith.mulf %21, %29 : vector<128x1xf32>
    %31 = arith.mulf %23, %29 : vector<128x1xf32>
    %32 = vector.extract_strided_slice %0 {offsets = [0, 0, 0], sizes = [1, 128, 32], strides = [1, 1, 1]} : vector<2x128x32xf32> to vector<1x128x32xf32>
    %33 = vector.shape_cast %32 : vector<1x128x32xf32> to vector<128x32xf32>
    %34 = vector.broadcast %30 : vector<128x1xf32> to vector<128x32xf32>
    %35 = arith.mulf %34, %33 : vector<128x32xf32>
    %36 = vector.extract_strided_slice %0 {offsets = [1, 0, 0], sizes = [1, 128, 32], strides = [1, 1, 1]} : vector<2x128x32xf32> to vector<1x128x32xf32>
    %37 = vector.shape_cast %36 : vector<1x128x32xf32> to vector<128x32xf32>
    %38 = vector.broadcast %31 : vector<128x1xf32> to vector<128x32xf32>
    %39 = arith.mulf %38, %37 : vector<128x32xf32>
    %40 = arith.addf %35, %39 : vector<128x32xf32>
    %c0_11 = arith.constant 0 : index
    %c0_12 = arith.constant 0 : index
    %41 = vector.load %arg5[%c0_11, %c0_12] : memref<128x32xf32, #tpu.memory_space<vmem>>, vector<128x32xf32>
    tpu.vector_store %arg5[%c0_11, %c0_12], %40 {strides = array<i32>} : memref<128x32xf32, #tpu.memory_space<vmem>>, vector<128x32xf32>,
    %42 = vector.shape_cast %30 : vector<128x1xf32> to vector<1x128xf32>
    %43 = vector.shape_cast %31 : vector<128x1xf32> to vector<1x128xf32>
    %44 = tpu.concatenate %42, %43 in 0 : vector<1x128xf32>, vector<1x128xf32> -> vector<2x128xf32>
    %c0_13 = arith.constant 0 : index
    %c0_14 = arith.constant 0 : index
    %45 = vector.load %arg6[%c0_13, %c0_14] : memref<2x128xf32, #tpu.memory_space<vmem>>, vector<2x128xf32>
    tpu.vector_store %arg6[%c0_13, %c0_14], %44 {strides = array<i32>} : memref<2x128xf32, #tpu.memory_space<vmem>>, vector<2x128xf32>,
    return
  }
  func.func @transform_0(%arg0: i32) -> (i32, i32, i32) {
    %c0_i32 = arith.constant 0 : i32
    %c0_i32_0 = arith.constant 0 : i32
    %c0_i32_1 = arith.constant 0 : i32
    return %c0_i32, %arg0, %c0_i32_0 : i32, i32, i32
  }
  func.func @transform_1(%arg0: i32) -> (i32, i32) {
    %c0_i32 = arith.constant 0 : i32
    %c0_i32_0 = arith.constant 0 : i32
    %c0_i32_1 = arith.constant 0 : i32
    return %c0_i32, %c0_i32_0 : i32, i32
  }
  func.func @transform_2(%arg0: i32) -> (i32, i32) {
    %c0_i32 = arith.constant 0 : i32
    %c0_i32_0 = arith.constant 0 : i32
    %c0_i32_1 = arith.constant 0 : i32
    return %c0_i32, %c0_i32_0 : i32, i32
  }
  func.func @transform_3(%arg0: i32) -> (i32, i32) {
    %c0_i32 = arith.constant 0 : i32
    %c0_i32_0 = arith.constant 0 : i32
    %c0_i32_1 = arith.constant 0 : i32
    return %c0_i32, %c0_i32_0 : i32, i32
  }
  func.func @transform_4(%arg0: i32) -> (i32, i32) {
    %c0_i32 = arith.constant 0 : i32
    %c0_i32_0 = arith.constant 0 : i32
    return %arg0, %c0_i32 : i32, i32
  }
  func.func @transform_5(%arg0: i32) -> (i32, i32) {
    %c0_i32 = arith.constant 0 : i32
    %c0_i32_0 = arith.constant 0 : i32
    return %c0_i32, %arg0 : i32, i32
  }
}

</mosaic_0001>

<llo_original>
// kernel: tpu_custom_call.1
$region0: #{tpu_custom_call.1}
  #allocation0 [shape = 'u32[]', space=smem, size = 0x4, offset = 0x4, fixed_abs, tag = 'smem constant byte address 0x4 - core index']
  #allocation1 [shape = 'u32[144,128]{1,0:T(1,128)}', space=vmem, size = 0x12000, scoped, tag = 'internal scratch']
  %s0 = inlined_call_operand.vmem [shape: f32[2,640,32], index: 0, kind: input, shape index: {}]
  %s1 = inlined_call_operand.vmem [shape: f32[32,64], index: 1, kind: input, shape index: {}]
  %s2 = inlined_call_operand.vmem [shape: f32[1,64], index: 2, kind: input, shape index: {}]
  %s3 = inlined_call_operand.vmem [shape: f32[1,64], index: 3, kind: input, shape index: {}]
  %s4 = inlined_call_operand.vmem [shape: f32[640,32], index: 4, kind: output, shape index: {0}]
  %s5 = inlined_call_operand.hbm [shape: f32[2,640], index: 5, kind: output, shape index: {1}]
  %6 = xla_tuple %s4, %s5
  %s7 = sld [smem:[#allocation0]]
  $region95: #{tpu_custom_call.1} parent=0
    _
  %s9 = ssub.s32 1, %s7
  %s10 = scalar_select 0, %s9, %s7
  $region1: #{tpu_custom_call.1} parent=0
    #allocation2 [shape = 'u8[262144]{0}', space=vmem, size = 0x40000, scoped, tag = 'input window, operand 0']
    #allocation3 [shape = 'u8[2048]{0}', space=vmem, size = 0x800, scoped, tag = 'output window, operand 1']
    #allocation4 [shape = 's32[2]{0}', space=sflag, size = 0x8, scoped, tag = 'scoped memory for tpu_custom_call.1']
    %11 = vsyncpa [#allocation4], 0
    %s12 = scalar_lea.sflag [#allocation4], 1
    %13 = vsyncpa %s12, 0
    loop: start=0, step=1, limit=7
    $region2: #{tpu_custom_call.1} parent=1 // loop_pre_header
      _
    $region3: #{tpu_custom_call.1} parent=1 // loop_header
      %s15 = sphi 0, %s19
      %p16 = scmp.ge.s32.totalorder %s15, 7
      %s25 = sphi 0, %s27
      %s28 = sphi 0, %s25
      %s29 = sphi 0, %s28
      %s45 = sphi 0, %s29
      %s49 = sphi 0, %s49
      %s51 = sphi 0, %s49
      %s52 = sphi 0, %s51
      %s66 = sphi 0, %s52
      %s70 = sphi 0, %s70
      %s72 = sphi 0, %s70
      %s73 = sphi 0, %s72
      %s87 = sphi 0, %s73
      %s91 = sphi 0, %s91
      %s93 = sphi 0, %s91
      %s94 = sphi 0, %s93
      %s108 = sphi 0, %s94
      %s114 = sphi 0, %s116
      %s117 = sphi 0, %s114
      %s118 = sphi 0, %s117
      %s134 = sphi 0, %s118
      %s140 = sphi 0, %s142
      %s143 = sphi 0, %s140
      %s144 = sphi 0, %s143
      %s160 = sphi 0, %s144
    $region4: #{tpu_custom_call.1} parent=1 // loop_header_branch
      %18 = sbr.rel (%p16) target = $region8
    $region5: #{tpu_custom_call.1} parent=1 // loop_body
      %s20 = ssub.s32 %s15, 1
      %s21 = ssub.s32 %s15, 2
      %s22 = sadd.s32 %s15, 1
      %s23 = ssub.s32 %s15, %s22
      %p24 = scmp.eq.s32.totalorder %s23, 0
      %s26 = sadd.s32 %s25, 1
      %s27 = scalar_select %p24, %s25, %s26
      %p30 = pneg %p24
      %p31 = scmp.eq.s32.totalorder %s15, 4
      %p32 = por %p30, %p31
      %p33 = scmp.ne.s32.totalorder %s25, %s28
      %p34 = scmp.eq.s32.totalorder %s15, 0
      %p35 = por %p33, %p34
      %p36 = scmp.ne.s32.totalorder %s25, %s28
      %p37 = scmp.eq.s32.totalorder %s20, 4
      %p38 = por %p36, %p37
      %p39 = scmp.ne.s32.totalorder %s28, %s29
      %p40 = scmp.eq.s32.totalorder %s20, 0
      %p41 = por %p39, %p40
      %p42 = scmp.ne.s32.totalorder %s28, %s29
      %p43 = scmp.eq.s32.totalorder %s21, 4
      %p44 = por %p42, %p43
      %p46 = scmp.ne.s32.totalorder %s29, %s45
      %p47 = scmp.eq.s32.totalorder %s21, 0
      %p48 = por %p46, %p47
      %s50 = sadd.s32 %s49, 1
      %p53 = scmp.eq.s32.totalorder %s15, 4
      %p54 = scmp.ne.s32.totalorder %s49, %s51
      %p55 = scmp.eq.s32.totalorder %s15, 0
      %p56 = por %p54, %p55
      %p57 = scmp.ne.s32.totalorder %s49, %s51
      %p58 = scmp.eq.s32.totalorder %s20, 4
      %p59 = por %p57, %p58
      %p60 = scmp.ne.s32.totalorder %s51, %s52
      %p61 = scmp.eq.s32.totalorder %s20, 0
      %p62 = por %p60, %p61
      %p63 = scmp.ne.s32.totalorder %s51, %s52
      %p64 = scmp.eq.s32.totalorder %s21, 4
      %p65 = por %p63, %p64
      %p67 = scmp.ne.s32.totalorder %s52, %s66
      %p68 = scmp.eq.s32.totalorder %s21, 0
      %p69 = por %p67, %p68
      %s71 = sadd.s32 %s70, 1
      %p74 = scmp.eq.s32.totalorder %s15, 4
      %p75 = scmp.ne.s32.totalorder %s70, %s72
      %p76 = scmp.eq.s32.totalorder %s15, 0
      %p77 = por %p75, %p76
      %p78 = scmp.ne.s32.totalorder %s70, %s72
      %p79 = scmp.eq.s32.totalorder %s20, 4
      %p80 = por %p78, %p79
      %p81 = scmp.ne.s32.totalorder %s72, %s73
      %p82 = scmp.eq.s32.totalorder %s20, 0
      %p83 = por %p81, %p82
      %p84 = scmp.ne.s32.totalorder %s72, %s73
      %p85 = scmp.eq.s32.totalorder %s21, 4
      %p86 = por %p84, %p85
      %p88 = scmp.ne.s32.totalorder %s73, %s87
      %p89 = scmp.eq.s32.totalorder %s21, 0
      %p90 = por %p88, %p89
      %s92 = sadd.s32 %s91, 1
      %p95 = scmp.eq.s32.totalorder %s15, 4
      %p96 = scmp.ne.s32.totalorder %s91, %s93
      %p97 = scmp.eq.s32.totalorder %s15, 0
      %p98 = por %p96, %p97
      %p99 = scmp.ne.s32.totalorder %s91, %s93
      %p100 = scmp.eq.s32.totalorder %s20, 4
      %p101 = por %p99, %p100
      %p102 = scmp.ne.s32.totalorder %s93, %s94
      %p103 = scmp.eq.s32.totalorder %s20, 0
      %p104 = por %p102, %p103
      %p105 = scmp.ne.s32.totalorder %s93, %s94
      %p106 = scmp.eq.s32.totalorder %s21, 4
      %p107 = por %p105, %p106
      %p109 = scmp.ne.s32.totalorder %s94, %s108
      %p110 = scmp.eq.s32.totalorder %s21, 0
      %p111 = por %p109, %p110
      %s112 = ssub.s32 %s15, %s22
      %p113 = scmp.eq.s32.totalorder %s112, 0
      %s115 = sadd.s32 %s114, 1
      %s116 = scalar_select %p113, %s114, %s115
      %p119 = pneg %p113
      %p120 = scmp.eq.s32.totalorder %s15, 4
      %p121 = por %p119, %p120
      %p122 = scmp.ne.s32.totalorder %s114, %s117
      %p123 = scmp.eq.s32.totalorder %s15, 0
      %p124 = por %p122, %p123
      %p125 = scmp.ne.s32.totalorder %s114, %s117
      %p126 = scmp.eq.s32.totalorder %s20, 4
      %p127 = por %p125, %p126
      %p128 = scmp.ne.s32.totalorder %s117, %s118
      %p129 = scmp.eq.s32.totalorder %s20, 0
      %p130 = por %p128, %p129
      %p131 = scmp.ne.s32.totalorder %s117, %s118
      %p132 = scmp.eq.s32.totalorder %s21, 4
      %p133 = por %p131, %p132
      %p135 = scmp.ne.s32.totalorder %s118, %s134
      %p136 = scmp.eq.s32.totalorder %s21, 0
      %p137 = por %p135, %p136
      %s138 = ssub.s32 %s15, %s22
      %p139 = scmp.eq.s32.totalorder %s138, 0
      %s141 = sadd.s32 %s140, 1
      %s142 = scalar_select %p139, %s140, %s141
      %p145 = pneg %p139
      %p146 = scmp.eq.s32.totalorder %s15, 4
      %p147 = por %p145, %p146
      %p148 = scmp.ne.s32.totalorder %s140, %s143
      %p149 = scmp.eq.s32.totalorder %s15, 0
      %p150 = por %p148, %p149
      %p151 = scmp.ne.s32.totalorder %s140, %s143
      %p152 = scmp.eq.s32.totalorder %s20, 4
      %p153 = por %p151, %p152
      %p154 = scmp.ne.s32.totalorder %s143, %s144
      %p155 = scmp.eq.s32.totalorder %s20, 0
      %p156 = por %p154, %p155
      %p157 = scmp.ne.s32.totalorder %s143, %s144
      %p158 = scmp.eq.s32.totalorder %s21, 4
      %p159 = por %p157, %p158
      %p161 = scmp.ne.s32.totalorder %s144, %s160
      %p162 = scmp.eq.s32.totalorder %s21, 0
      %p163 = por %p161, %p162
      %p164 = scmp.le.s32.totalorder 1, %s15
      %p165 = scmp.lt.s32.totalorder %s15, 6
      %p166 = pnand %p164, %p165
      %p167 = pneg %p166
      // Predicated region
      $region9: #{tpu_custom_call.1} parent=5 // pred_check
        _
      $region10: #{tpu_custom_call.1} parent=5 // pred_check_branch
        %169 = sbr.rel (%p166) target = $region12
      $region11: #{tpu_custom_call.1} parent=5 // pred_region
        %s170 = ssub.s32 %s15, 1
        // Predicated region
        $region13: #{tpu_custom_call.1} parent=11 // pred_check
          %p171 = pneg %p62
        $region14: #{tpu_custom_call.1} parent=11 // pred_check_branch
          %173 = sbr.rel (%p171) target = $region16
        $region15: #{tpu_custom_call.1} parent=11 // pred_region
          _
        $region16: #{tpu_custom_call.1} parent=11 // pred_fallthru
          _
        // Predicated region
        $region17: #{tpu_custom_call.1} parent=11 // pred_check
          %p174 = pneg %p83
        $region18: #{tpu_custom_call.1} parent=11 // pred_check_branch
          %176 = sbr.rel (%p174) target = $region20
        $region19: #{tpu_custom_call.1} parent=11 // pred_region
          _
        $region20: #{tpu_custom_call.1} parent=11 // pred_fallthru
          _
        // Predicated region
        $region21: #{tpu_custom_call.1} parent=11 // pred_check
          %p177 = pneg %p104
        $region22: #{tpu_custom_call.1} parent=11 // pred_check_branch
          %179 = sbr.rel (%p177) target = $region24
        $region23: #{tpu_custom_call.1} parent=11 // pred_region
          _
        $region24: #{tpu_custom_call.1} parent=11 // pred_fallthru
          _
      $region12: #{tpu_custom_call.1} parent=5 // pred_fallthru
        _
      %p180 = scmp.lt.s32.totalorder %s15, 5
      // Predicated region
      $region25: #{tpu_custom_call.1} parent=5 // pred_check
        %p181 = pneg %p180
      $region26: #{tpu_custom_call.1} parent=5 // pred_check_branch
        %183 = sbr.rel (%p181) target = $region28
      $region27: #{tpu_custom_call.1} parent=5 // pred_region
        // Predicated region
        $region29: #{tpu_custom_call.1} parent=27 // pred_check
          %p184 = pneg %p35
        $region30: #{tpu_custom_call.1} parent=27 // pred_check_branch
          %186 = sbr.rel (%p184) target = $region32
        $region31: #{tpu_custom_call.1} parent=27 // pred_region
          %s187 = sand.u32 %s25, 1
          %s188 = sand.u32 %s25, 1
          %s189 = smul.addr %s188, 256
          %s190 = scalar_lea.vmem [#allocation2], %s189
          %s191 = smul.u32 16, %s15
          %s192 = smul.addr %s191, 8
          %s193 = scalar_lea.vmem %s0, %s192
          // Predicated region
          $region33: #{tpu_custom_call.1} parent=31 // pred_check
            _
          $region34: #{tpu_custom_call.1} parent=31 // pred_check_branch
            %195 = sbr.rel (0) target = $region36
          $region35: #{tpu_custom_call.1} parent=31 // pred_region
            // Predicated region
            $region37: #{tpu_custom_call.1} parent=35 // pred_check
              _
            $region38: #{tpu_custom_call.1} parent=35 // pred_check_branch
              %197 = sbr.rel (0) target = $region40
            $region39: #{tpu_custom_call.1} parent=35 // pred_region
              // Predicated region
              $region52: #{tpu_custom_call.1} parent=39 // pred_check
                _
              $region53: #{tpu_custom_call.1} parent=39 // pred_check_branch
                %274 = sbr.rel (0) target = $region55
              $region54: #{tpu_custom_call.1} parent=39 // pred_region
                loop: start=0, step=1, limit=1
                $region56: #{tpu_custom_call.1} parent=54 // loop_pre_header
                  _
                $region57: #{tpu_custom_call.1} parent=54 // loop_header
                  %s276 = sphi 0, %s280
                  %p277 = scmp.ge.s32.totalorder %s276, 1
                  %s281 = sphi %s193, %s193
                  %s282 = sphi %s190, %s190
                $region58: #{tpu_custom_call.1} parent=54 // loop_header_branch
                  %279 = sbr.rel (%p277) target = $region62
                $region59: #{tpu_custom_call.1} parent=54 // loop_body
                  %v283 = vld [vmem:[%s281] sm:$0xff]
                  %284 = vst [vmem:[%s282] sm:$0xff] %v283
                  %v285 = vld [vmem:[%s281 + $0x8] sm:$0xff]
                  %286 = vst [vmem:[%s282 + $0x8] sm:$0xff] %v285
                  %v287 = vld [vmem:[%s281 + $0x10] sm:$0xff]
                  %288 = vst [vmem:[%s282 + $0x10] sm:$0xff] %v287
                  %v289 = vld [vmem:[%s281 + $0x18] sm:$0xff]
                  %290 = vst [vmem:[%s282 + $0x18] sm:$0xff] %v289
                  %v291 = vld [vmem:[%s281 + $0x20] sm:$0xff]
                  %292 = vst [vmem:[%s282 + $0x20] sm:$0xff] %v291
                  %v293 = vld [vmem:[%s281 + $0x28] sm:$0xff]
                  %294 = vst [vmem:[%s282 + $0x28] sm:$0xff] %v293
                  %v295 = vld [vmem:[%s281 + $0x30] sm:$0xff]
                  %296 = vst [vmem:[%s282 + $0x30] sm:$0xff] %v295
                  %v297 = vld [vmem:[%s281 + $0x38] sm:$0xff]
                  %298 = vst [vmem:[%s282 + $0x38] sm:$0xff] %v297
                  %v299 = vld [vmem:[%s281 + $0x40] sm:$0xff]
                  %300 = vst [vmem:[%s282 + $0x40] sm:$0xff] %v299
                  %v301 = vld [vmem:[%s281 + $0x48] sm:$0xff]
                  %302 = vst [vmem:[%s282 + $0x48] sm:$0xff] %v301
                  %v303 = vld [vmem:[%s281 + $0x50] sm:$0xff]
                  %304 = vst [vmem:[%s282 + $0x50] sm:$0xff] %v303
                  %v305 = vld [vmem:[%s281 + $0x58] sm:$0xff]
                  %306 = vst [vmem:[%s282 + $0x58] sm:$0xff] %v305
                  %v307 = vld [vmem:[%s281 + $0x60] sm:$0xff]
                  %308 = vst [vmem:[%s282 + $0x60] sm:$0xff] %v307
                  %v309 = vld [vmem:[%s281 + $0x68] sm:$0xff]
                  %310 = vst [vmem:[%s282 + $0x68] sm:$0xff] %v309
                  %v311 = vld [vmem:[%s281 + $0x70] sm:$0xff]
                  %312 = vst [vmem:[%s282 + $0x70] sm:$0xff] %v311
                  %v313 = vld [vmem:[%s281 + $0x78] sm:$0xff]
                  %314 = vst [vmem:[%s282 + $0x78] sm:$0xff] %v313
                  %v315 = vld [vmem:[%s281 + $0x280] sm:$0xff]
                  %316 = vst [vmem:[%s282 + $0x80] sm:$0xff] %v315
                  %v317 = vld [vmem:[%s281 + $0x288] sm:$0xff]
                  %318 = vst [vmem:[%s282 + $0x88] sm:$0xff] %v317
                  %v319 = vld [vmem:[%s281 + $0x290] sm:$0xff]
                  %320 = vst [vmem:[%s282 + $0x90] sm:$0xff] %v319
                  %v321 = vld [vmem:[%s281 + $0x298] sm:$0xff]
                  %322 = vst [vmem:[%s282 + $0x98] sm:$0xff] %v321
                  %v323 = vld [vmem:[%s281 + $0x2a0] sm:$0xff]
                  %324 = vst [vmem:[%s282 + $0xa0] sm:$0xff] %v323
                  %v325 = vld [vmem:[%s281 + $0x2a8] sm:$0xff]
                  %326 = vst [vmem:[%s282 + $0xa8] sm:$0xff] %v325
                  %v327 = vld [vmem:[%s281 + $0x2b0] sm:$0xff]
                  %328 = vst [vmem:[%s282 + $0xb0] sm:$0xff] %v327
                  %v329 = vld [vmem:[%s281 + $0x2b8] sm:$0xff]
                  %330 = vst [vmem:[%s282 + $0xb8] sm:$0xff] %v329
                  %v331 = vld [vmem:[%s281 + $0x2c0] sm:$0xff]
                  %332 = vst [vmem:[%s282 + $0xc0] sm:$0xff] %v331
                  %v333 = vld [vmem:[%s281 + $0x2c8] sm:$0xff]
                  %334 = vst [vmem:[%s282 + $0xc8] sm:$0xff] %v333
                  %v335 = vld [vmem:[%s281 + $0x2d0] sm:$0xff]
                  %336 = vst [vmem:[%s282 + $0xd0] sm:$0xff] %v335
                  %v337 = vld [vmem:[%s281 + $0x2d8] sm:$0xff]
                  %338 = vst [vmem:[%s282 + $0xd8] sm:$0xff] %v337
                  %v339 = vld [vmem:[%s281 + $0x2e0] sm:$0xff]
                  %340 = vst [vmem:[%s282 + $0xe0] sm:$0xff] %v339
                  %v341 = vld [vmem:[%s281 + $0x2e8] sm:$0xff]
                  %342 = vst [vmem:[%s282 + $0xe8] sm:$0xff] %v341
                  %v343 = vld [vmem:[%s281 + $0x2f0] sm:$0xff]
                  %344 = vst [vmem:[%s282 + $0xf0] sm:$0xff] %v343
                  %v345 = vld [vmem:[%s281 + $0x2f8] sm:$0xff]
                  %346 = vst [vmem:[%s282 + $0xf8] sm:$0xff] %v345
                $region60: #{tpu_custom_call.1} parent=54 // loop_footer
                  %s280 = sadd.s32 1, %s276
                $region61: #{tpu_custom_call.1} parent=54 // loop_footer_branch
                  %275 = sbr.rel target = $region57
                $region62: #{tpu_custom_call.1} parent=54 // loop_exit
                  _
              $region55: #{tpu_custom_call.1} parent=39 // pred_fallthru
                _
              // Predicated region
              $region63: #{tpu_custom_call.1} parent=39 // pred_check
                _
              $region64: #{tpu_custom_call.1} parent=39 // pred_check_branch
                %348 = sbr.rel target = $region66
              $region65: #{tpu_custom_call.1} parent=39 // pred_region
                _
              $region66: #{tpu_custom_call.1} parent=39 // pred_fallthru
                _
            $region40: #{tpu_custom_call.1} parent=35 // pred_fallthru
              _
            // Predicated region
            $region41: #{tpu_custom_call.1} parent=35 // pred_check
              _
            $region42: #{tpu_custom_call.1} parent=35 // pred_check_branch
              %199 = sbr.rel target = $region44
            $region43: #{tpu_custom_call.1} parent=35 // pred_region
              loop: start=0, step=1, limit=1
              $region45: #{tpu_custom_call.1} parent=43 // loop_pre_header
                _
              $region46: #{tpu_custom_call.1} parent=43 // loop_header
                %s202 = sphi 0, %s206
                %p203 = scmp.ge.s32.totalorder %s202, 1
                %s207 = sphi %s193, %s193
                %s208 = sphi %s190, %s190
              $region47: #{tpu_custom_call.1} parent=43 // loop_header_branch
                %205 = sbr.rel (%p203) target = $region51
              $region48: #{tpu_custom_call.1} parent=43 // loop_body
                %v209 = vld [vmem:[%s207] sm:$0xff]
                %210 = vst [vmem:[%s208] sm:$0xff] %v209
                %v211 = vld [vmem:[%s207 + $0x8] sm:$0xff]
                %212 = vst [vmem:[%s208 + $0x8] sm:$0xff] %v211
                %v213 = vld [vmem:[%s207 + $0x10] sm:$0xff]
                %214 = vst [vmem:[%s208 + $0x10] sm:$0xff] %v213
                %v215 = vld [vmem:[%s207 + $0x18] sm:$0xff]
                %216 = vst [vmem:[%s208 + $0x18] sm:$0xff] %v215
                %v217 = vld [vmem:[%s207 + $0x20] sm:$0xff]
                %218 = vst [vmem:[%s208 + $0x20] sm:$0xff] %v217
                %v219 = vld [vmem:[%s207 + $0x28] sm:$0xff]
                %220 = vst [vmem:[%s208 + $0x28] sm:$0xff] %v219
                %v221 = vld [vmem:[%s207 + $0x30] sm:$0xff]
                %222 = vst [vmem:[%s208 + $0x30] sm:$0xff] %v221
                %v223 = vld [vmem:[%s207 + $0x38] sm:$0xff]
                %224 = vst [vmem:[%s208 + $0x38] sm:$0xff] %v223
                %v225 = vld [vmem:[%s207 + $0x40] sm:$0xff]
                %226 = vst [vmem:[%s208 + $0x40] sm:$0xff] %v225
                %v227 = vld [vmem:[%s207 + $0x48] sm:$0xff]
                %228 = vst [vmem:[%s208 + $0x48] sm:$0xff] %v227
                %v229 = vld [vmem:[%s207 + $0x50] sm:$0xff]
                %230 = vst [vmem:[%s208 + $0x50] sm:$0xff] %v229
                %v231 = vld [vmem:[%s207 + $0x58] sm:$0xff]
                %232 = vst [vmem:[%s208 + $0x58] sm:$0xff] %v231
                %v233 = vld [vmem:[%s207 + $0x60] sm:$0xff]
                %234 = vst [vmem:[%s208 + $0x60] sm:$0xff] %v233
                %v235 = vld [vmem:[%s207 + $0x68] sm:$0xff]
                %236 = vst [vmem:[%s208 + $0x68] sm:$0xff] %v235
                %v237 = vld [vmem:[%s207 + $0x70] sm:$0xff]
                %238 = vst [vmem:[%s208 + $0x70] sm:$0xff] %v237
                %v239 = vld [vmem:[%s207 + $0x78] sm:$0xff]
                %240 = vst [vmem:[%s208 + $0x78] sm:$0xff] %v239
                %v241 = vld [vmem:[%s207 + $0x280] sm:$0xff]
                %242 = vst [vmem:[%s208 + $0x80] sm:$0xff] %v241
                %v243 = vld [vmem:[%s207 + $0x288] sm:$0xff]
                %244 = vst [vmem:[%s208 + $0x88] sm:$0xff] %v243
                %v245 = vld [vmem:[%s207 + $0x290] sm:$0xff]
                %246 = vst [vmem:[%s208 + $0x90] sm:$0xff] %v245
                %v247 = vld [vmem:[%s207 + $0x298] sm:$0xff]
                %248 = vst [vmem:[%s208 + $0x98] sm:$0xff] %v247
                %v249 = vld [vmem:[%s207 + $0x2a0] sm:$0xff]
                %250 = vst [vmem:[%s208 + $0xa0] sm:$0xff] %v249
                %v251 = vld [vmem:[%s207 + $0x2a8] sm:$0xff]
                %252 = vst [vmem:[%s208 + $0xa8] sm:$0xff] %v251
                %v253 = vld [vmem:[%s207 + $0x2b0] sm:$0xff]
                %254 = vst [vmem:[%s208 + $0xb0] sm:$0xff] %v253
                %v255 = vld [vmem:[%s207 + $0x2b8] sm:$0xff]
                %256 = vst [vmem:[%s208 + $0xb8] sm:$0xff] %v255
                %v257 = vld [vmem:[%s207 + $0x2c0] sm:$0xff]
                %258 = vst [vmem:[%s208 + $0xc0] sm:$0xff] %v257
                %v259 = vld [vmem:[%s207 + $0x2c8] sm:$0xff]
                %260 = vst [vmem:[%s208 + $0xc8] sm:$0xff] %v259
                %v261 = vld [vmem:[%s207 + $0x2d0] sm:$0xff]
                %262 = vst [vmem:[%s208 + $0xd0] sm:$0xff] %v261
                %v263 = vld [vmem:[%s207 + $0x2d8] sm:$0xff]
                %264 = vst [vmem:[%s208 + $0xd8] sm:$0xff] %v263
                %v265 = vld [vmem:[%s207 + $0x2e0] sm:$0xff]
                %266 = vst [vmem:[%s208 + $0xe0] sm:$0xff] %v265
                %v267 = vld [vmem:[%s207 + $0x2e8] sm:$0xff]
                %268 = vst [vmem:[%s208 + $0xe8] sm:$0xff] %v267
                %v269 = vld [vmem:[%s207 + $0x2f0] sm:$0xff]
                %270 = vst [vmem:[%s208 + $0xf0] sm:$0xff] %v269
                %v271 = vld [vmem:[%s207 + $0x2f8] sm:$0xff]
                %272 = vst [vmem:[%s208 + $0xf8] sm:$0xff] %v271
              $region49: #{tpu_custom_call.1} parent=43 // loop_footer
                %s206 = sadd.s32 1, %s202
              $region50: #{tpu_custom_call.1} parent=43 // loop_footer_branch
                %201 = sbr.rel target = $region46
              $region51: #{tpu_custom_call.1} parent=43 // loop_exit
                _
            $region44: #{tpu_custom_call.1} parent=35 // pred_fallthru
              _
          $region36: #{tpu_custom_call.1} parent=31 // pred_fallthru
            _
          %349 = vnop
        $region32: #{tpu_custom_call.1} parent=27 // pred_fallthru
          _
      $region28: #{tpu_custom_call.1} parent=5 // pred_fallthru
        _
      %p350 = scmp.le.s32.totalorder 1, %s15
      %p351 = scmp.lt.s32.totalorder %s15, 6
      %p352 = pnand %p350, %p351
      %p353 = pneg %p352
      // Predicated region
      $region67: #{tpu_custom_call.1} parent=5 // pred_check
        _
      $region68: #{tpu_custom_call.1} parent=5 // pred_check_branch
        %355 = sbr.rel (%p352) target = $region70
      $region69: #{tpu_custom_call.1} parent=5 // pred_region
        %s356 = ssub.s32 %s15, 1
        %s357 = sand.u32 %s28, 1
        %s358 = sand.u32 %s28, 1
        %s359 = smul.addr %s358, 256
        %s360 = scalar_lea.vmem [#allocation2], %s359
        // Predicated region
        $region71: #{tpu_custom_call.1} parent=69 // pred_check
          %p361 = pneg %p41
        $region72: #{tpu_custom_call.1} parent=69 // pred_check_branch
          %363 = sbr.rel (%p361) target = $region74
        $region73: #{tpu_custom_call.1} parent=69 // pred_region
          _
        $region74: #{tpu_custom_call.1} parent=69 // pred_fallthru
          _
        %s364 = sand.u32 %s28, 1
        %s365 = sand.u32 %s28, 1
        %s366 = smul.addr %s365, 256
        %s367 = scalar_lea.vmem [#allocation2], %s366
        %p368 = pneg %p41
        %p369 = pneg %p38
        %p370 = pneg %p62
        %p371 = pneg %p59
        %p372 = pneg %p83
        %p373 = pneg %p80
        %p374 = pneg %p104
        %p375 = pneg %p101
        %p376 = pneg %p130
        %p377 = pneg %p127
        %s378 = smul.u32 16, %s20
        %p379 = scmp.lt.s32.totalorder %s378, 79
        %s380 = scalar_select %p379, %s378, 79
        %s381 = smul.addr %s380, 8
        %s382 = scalar_lea.vmem %s4, %s381
        %p383 = pneg %p156
        %p384 = pneg %p153
        %s385 = sand.u32 %s143, 1
        %s386 = scalar_lea.sflag [#allocation4], %s385
        %s387 = sand.u32 %s143, 1
        %s388 = smul.addr %s387, 2
        %s389 = scalar_lea.vmem [#allocation3], %s388
        %s390 = smul.u32 16, %s20
        %s391 = smul.u32 16, %s20
        %p392 = scmp.lt.s32.totalorder %s391, 79
        %s393 = scalar_select %p392, %s391, 79
        %s394 = smul.addr %s393, 8
        %s395 = scalar_lea.vmem %s4, %s394
        %s396 = smul.u32 16, %s20
        %v397 = vld [vmem:[%s360] sm:$0xff]
        %v398 = vld [vmem:[%s360 + $0x8] sm:$0xff]
        %v399 = vld [vmem:[%s360 + $0x10] sm:$0xff]
        %v400 = vld [vmem:[%s360 + $0x18] sm:$0xff]
        %v401 = vld [vmem:[%s360 + $0x20] sm:$0xff]
        %v402 = vld [vmem:[%s360 + $0x28] sm:$0xff]
        %v403 = vld [vmem:[%s360 + $0x30] sm:$0xff]
        %v404 = vld [vmem:[%s360 + $0x38] sm:$0xff]
        %v405 = vld [vmem:[%s360 + $0x40] sm:$0xff]
        %v406 = vld [vmem:[%s360 + $0x48] sm:$0xff]
        %v407 = vld [vmem:[%s360 + $0x50] sm:$0xff]
        %v408 = vld [vmem:[%s360 + $0x58] sm:$0xff]
        %v409 = vld [vmem:[%s360 + $0x60] sm:$0xff]
        %v410 = vld [vmem:[%s360 + $0x68] sm:$0xff]
        %v411 = vld [vmem:[%s360 + $0x70] sm:$0xff]
        %v412 = vld [vmem:[%s360 + $0x78] sm:$0xff]
        %v413 = vld [vmem:[%s360 + $0x80] sm:$0xff]
        %v414 = vld [vmem:[%s360 + $0x88] sm:$0xff]
        %v415 = vld [vmem:[%s360 + $0x90] sm:$0xff]
        %v416 = vld [vmem:[%s360 + $0x98] sm:$0xff]
        %v417 = vld [vmem:[%s360 + $0xa0] sm:$0xff]
        %v418 = vld [vmem:[%s360 + $0xa8] sm:$0xff]
        %v419 = vld [vmem:[%s360 + $0xb0] sm:$0xff]
        %v420 = vld [vmem:[%s360 + $0xb8] sm:$0xff]
        %v421 = vld [vmem:[%s360 + $0xc0] sm:$0xff]
        %v422 = vld [vmem:[%s360 + $0xc8] sm:$0xff]
        %v423 = vld [vmem:[%s360 + $0xd0] sm:$0xff]
        %v424 = vld [vmem:[%s360 + $0xd8] sm:$0xff]
        %v425 = vld [vmem:[%s360 + $0xe0] sm:$0xff]
        %v426 = vld [vmem:[%s360 + $0xe8] sm:$0xff]
        %v427 = vld [vmem:[%s360 + $0xf0] sm:$0xff]
        %v428 = vld [vmem:[%s360 + $0xf8] sm:$0xff]
        %v429 = vld [vmem:[%s1] sm:$0xff]
        %v430 = vld [vmem:[%s1 + $0x8] sm:$0xff]
        %v431 = vld [vmem:[%s1 + $0x10] sm:$0xff]
        %v432 = vld [vmem:[%s1 + $0x18] sm:$0xff]
        %v433 = vld [vmem:[%s2] sm:$0x1]
        %v434 = vld [vmem:[%s3] sm:$0x1]
        %v436 = vlaneseq
        %v437 = vshrl.u32 %v436, 7
        %v438 = vsub.s32 0, %v437
        %v439 = vrot.slane %v433, %v438
        %vm441 = vcmask 261120
        %v443 = vsel %vm441, %v397, 0
        %v446 = vsel %vm441, %v398, 0
        %v449 = vsel %vm441, %v399, 0
        %v452 = vsel %vm441, %v400, 0
        %v455 = vsel %vm441, %v401, 0
        %v458 = vsel %vm441, %v402, 0
        %v461 = vsel %vm441, %v403, 0
        %v464 = vsel %vm441, %v404, 0
        %v467 = vsel %vm441, %v405, 0
        %v470 = vsel %vm441, %v406, 0
        %v473 = vsel %vm441, %v407, 0
        %v476 = vsel %vm441, %v408, 0
        %v479 = vsel %vm441, %v409, 0
        %v482 = vsel %vm441, %v410, 0
        %v485 = vsel %vm441, %v411, 0
        %v488 = vsel %vm441, %v412, 0
        %v491 = vsel %vm441, %v413, 0
        %v494 = vsel %vm441, %v414, 0
        %v497 = vsel %vm441, %v415, 0
        %v500 = vsel %vm441, %v416, 0
        %v503 = vsel %vm441, %v417, 0
        %v506 = vsel %vm441, %v418, 0
        %v509 = vsel %vm441, %v419, 0
        %v512 = vsel %vm441, %v420, 0
        %v515 = vsel %vm441, %v421, 0
        %v518 = vsel %vm441, %v422, 0
        %v521 = vsel %vm441, %v423, 0
        %v524 = vsel %vm441, %v424, 0
        %v527 = vsel %vm441, %v425, 0
        %v530 = vsel %vm441, %v426, 0
        %v533 = vsel %vm441, %v427, 0
        %v536 = vsel %vm441, %v428, 0
        %538 = vmatprep.subr.mxu0 0.0
        %539 = vmatpush1.msra.mxu0 %v429
        %540 = vmatprep.subr.mxu0 0.0
        %541 = vmatpush1.msra.mxu0 %v430
        %542 = vmatprep.subr.mxu0 0.0
        %543 = vmatpush1.msra.mxu0 %v431
        %544 = vmatprep.subr.mxu0 0.0
        %545 = vmatpush1.msra.mxu0 %v432
        %546 = vmatprep.subr.mxu0 0.0
        %547 = vmatpush1.msra.mxu0 0.0
        %548 = vmatprep.subr.mxu0 0.0
        %549 = vmatpush1.msra.mxu0 0.0
        %550 = vmatprep.subr.mxu0 0.0
        %551 = vmatpush1.msra.mxu0 0.0
        %552 = vmatprep.subr.mxu0 0.0
        %553 = vmatpush1.msra.mxu0 0.0
        %554 = vmatprep.subr.mxu0 0.0
        %555 = vmatpush1.msra.mxu0 0.0
        %556 = vmatprep.subr.mxu0 0.0
        %557 = vmatpush1.msra.mxu0 0.0
        %558 = vmatprep.subr.mxu0 0.0
        %559 = vmatpush1.msra.mxu0 0.0
        %560 = vmatprep.subr.mxu0 0.0
        %561 = vmatpush1.msra.mxu0 0.0
        %562 = vmatprep.subr.mxu0 0.0
        %563 = vmatpush1.msra.mxu0 0.0
        %564 = vmatprep.subr.mxu0 0.0
        %565 = vmatpush1.msra.mxu0 0.0
        %566 = vmatprep.subr.mxu0 0.0
        %567 = vmatpush1.msra.mxu0 0.0
        %568 = vmatprep.subr.mxu0 0.0
        %569 = vmatpush1.msra.mxu0 0.0
        %570 = vmatprep.subr.mxu0 0.0
        %571 = vmatpush1.msra.mxu0 0.0
        %572 = vmatprep.subr.mxu0 0.0
        %573 = vmatpush1.msra.mxu0 0.0
        %574 = vmatprep.subr.mxu0 0.0
        %575 = vmatpush1.msra.mxu0 0.0
        %576 = vmatprep.subr.mxu0 0.0
        %577 = vmatpush1.msra.mxu0 0.0
        %578 = vmatprep.subr.mxu0 0.0
        %579 = vmatpush1.msra.mxu0 0.0
        %580 = vmatprep.subr.mxu0 0.0
        %581 = vmatpush1.msra.mxu0 0.0
        %582 = vmatprep.subr.mxu0 0.0
        %583 = vmatpush1.msra.mxu0 0.0
        %584 = vmatprep.subr.mxu0 0.0
        %585 = vmatpush1.msra.mxu0 0.0
        %586 = vmatprep.subr.mxu0 0.0
        %587 = vmatpush1.msra.mxu0 0.0
        %588 = vmatprep.subr.mxu0 0.0
        %589 = vmatpush1.msra.mxu0 0.0
        %590 = vmatprep.subr.mxu0 0.0
        %591 = vmatpush1.msra.mxu0 0.0
        %592 = vmatprep.subr.mxu0 0.0
        %593 = vmatpush1.msra.mxu0 0.0
        %594 = vmatprep.subr.mxu0 0.0
        %595 = vmatpush1.msra.mxu0 0.0
        %596 = vmatprep.subr.mxu0 0.0
        %597 = vmatpush1.msra.mxu0 0.0
        %598 = vmatprep.subr.mxu0 0.0
        %599 = vmatpush1.msra.mxu0 0.0
        %600 = vmatprep.subr.mxu0 0.0
        %601 = vmatpush1.msra.mxu0 0.0
        %602 = vmatprep.mubr.f32.mxu0 0.0
        %603 = vmatmul.mubr.f32.gmra.mrb[0].mxu0 %v443
        %v604 = vpop.f32.mrb[0].mxu0
        %v605 = vadd.f32 %v439, %v604
        %v606 = vpop.f32.mrb[0].mxu0
        %607 = vmatprep.mubr.f32.mxu0 0.0
        %608 = vmatmul.mubr.f32.gmra.mrb[0].mxu0 %v446
        %v609 = vpop.f32.mrb[0].mxu0
        %v610 = vadd.f32 %v439, %v609
        %v611 = vpop.f32.mrb[0].mxu0
        %612 = vmatprep.mubr.f32.mxu0 0.0
        %613 = vmatmul.mubr.f32.gmra.mrb[0].mxu0 %v449
        %v614 = vpop.f32.mrb[0].mxu0
        %v615 = vadd.f32 %v439, %v614
        %v616 = vpop.f32.mrb[0].mxu0
        %617 = vmatprep.mubr.f32.mxu0 0.0
        %618 = vmatmul.mubr.f32.gmra.mrb[0].mxu0 %v452
        %v619 = vpop.f32.mrb[0].mxu0
        %v620 = vadd.f32 %v439, %v619
        %v621 = vpop.f32.mrb[0].mxu0
        %622 = vmatprep.mubr.f32.mxu0 0.0
        %623 = vmatmul.mubr.f32.gmra.mrb[0].mxu0 %v455
        %v624 = vpop.f32.mrb[0].mxu0
        %v625 = vadd.f32 %v439, %v624
        %v626 = vpop.f32.mrb[0].mxu0
        %627 = vmatprep.mubr.f32.mxu0 0.0
        %628 = vmatmul.mubr.f32.gmra.mrb[0].mxu0 %v458
        %v629 = vpop.f32.mrb[0].mxu0
        %v630 = vadd.f32 %v439, %v629
        %v631 = vpop.f32.mrb[0].mxu0
        %632 = vmatprep.mubr.f32.mxu0 0.0
        %633 = vmatmul.mubr.f32.gmra.mrb[0].mxu0 %v461
        %v634 = vpop.f32.mrb[0].mxu0
        %v635 = vadd.f32 %v439, %v634
        %v636 = vpop.f32.mrb[0].mxu0
        %637 = vmatprep.mubr.f32.mxu0 0.0
        %638 = vmatmul.mubr.f32.gmra.mrb[0].mxu0 %v464
        %v639 = vpop.f32.mrb[0].mxu0
        %v640 = vadd.f32 %v439, %v639
        %v641 = vpop.f32.mrb[0].mxu0
        %642 = vmatprep.mubr.f32.mxu0 0.0
        %643 = vmatmul.mubr.f32.gmra.mrb[0].mxu0 %v467
        %v644 = vpop.f32.mrb[0].mxu0
        %v645 = vadd.f32 %v439, %v644
        %v646 = vpop.f32.mrb[0].mxu0
        %647 = vmatprep.mubr.f32.mxu0 0.0
        %648 = vmatmul.mubr.f32.gmra.mrb[0].mxu0 %v470
        %v649 = vpop.f32.mrb[0].mxu0
        %v650 = vadd.f32 %v439, %v649
        %v651 = vpop.f32.mrb[0].mxu0
        %652 = vmatprep.mubr.f32.mxu0 0.0
        %653 = vmatmul.mubr.f32.gmra.mrb[0].mxu0 %v473
        %v654 = vpop.f32.mrb[0].mxu0
        %v655 = vadd.f32 %v439, %v654
        %v656 = vpop.f32.mrb[0].mxu0
        %657 = vmatprep.mubr.f32.mxu0 0.0
        %658 = vmatmul.mubr.f32.gmra.mrb[0].mxu0 %v476
        %v659 = vpop.f32.mrb[0].mxu0
        %v660 = vadd.f32 %v439, %v659
        %v661 = vpop.f32.mrb[0].mxu0
        %662 = vmatprep.mubr.f32.mxu0 0.0
        %663 = vmatmul.mubr.f32.gmra.mrb[0].mxu0 %v479
        %v664 = vpop.f32.mrb[0].mxu0
        %v665 = vadd.f32 %v439, %v664
        %v666 = vpop.f32.mrb[0].mxu0
        %667 = vmatprep.mubr.f32.mxu0 0.0
        %668 = vmatmul.mubr.f32.gmra.mrb[0].mxu0 %v482
        %v669 = vpop.f32.mrb[0].mxu0
        %v670 = vadd.f32 %v439, %v669
        %v671 = vpop.f32.mrb[0].mxu0
        %672 = vmatprep.mubr.f32.mxu0 0.0
        %673 = vmatmul.mubr.f32.gmra.mrb[0].mxu0 %v485
        %v674 = vpop.f32.mrb[0].mxu0
        %v675 = vadd.f32 %v439, %v674
        %v676 = vpop.f32.mrb[0].mxu0
        %677 = vmatprep.mubr.f32.mxu0 0.0
        %678 = vmatmul.mubr.f32.gmra.mrb[0].mxu0 %v488
        %v679 = vpop.f32.mrb[0].mxu0
        %v680 = vadd.f32 %v439, %v679
        %v681 = vpop.f32.mrb[0].mxu0
        %682 = vmatprep.mubr.f32.mxu0 0.0
        %683 = vmatmul.mubr.f32.gmra.mrb[0].mxu0 %v491
        %v684 = vpop.f32.mrb[0].mxu0
        %v685 = vadd.f32 %v439, %v684
        %v686 = vpop.f32.mrb[0].mxu0
        %687 = vmatprep.mubr.f32.mxu0 0.0
        %688 = vmatmul.mubr.f32.gmra.mrb[0].mxu0 %v494
        %v689 = vpop.f32.mrb[0].mxu0
        %v690 = vadd.f32 %v439, %v689
        %v691 = vpop.f32.mrb[0].mxu0
        %692 = vmatprep.mubr.f32.mxu0 0.0
        %693 = vmatmul.mubr.f32.gmra.mrb[0].mxu0 %v497
        %v694 = vpop.f32.mrb[0].mxu0
        %v695 = vadd.f32 %v439, %v694
        %v696 = vpop.f32.mrb[0].mxu0
        %697 = vmatprep.mubr.f32.mxu0 0.0
        %698 = vmatmul.mubr.f32.gmra.mrb[0].mxu0 %v500
        %v699 = vpop.f32.mrb[0].mxu0
        %v700 = vadd.f32 %v439, %v699
        %v701 = vpop.f32.mrb[0].mxu0
        %702 = vmatprep.mubr.f32.mxu0 0.0
        %703 = vmatmul.mubr.f32.gmra.mrb[0].mxu0 %v503
        %v704 = vpop.f32.mrb[0].mxu0
        %v705 = vadd.f32 %v439, %v704
        %v706 = vpop.f32.mrb[0].mxu0
        %707 = vmatprep.mubr.f32.mxu0 0.0
        %708 = vmatmul.mubr.f32.gmra.mrb[0].mxu0 %v506
        %v709 = vpop.f32.mrb[0].mxu0
        %v710 = vadd.f32 %v439, %v709
        %v711 = vpop.f32.mrb[0].mxu0
        %712 = vmatprep.mubr.f32.mxu0 0.0
        %713 = vmatmul.mubr.f32.gmra.mrb[0].mxu0 %v509
        %v714 = vpop.f32.mrb[0].mxu0
        %v715 = vadd.f32 %v439, %v714
        %v716 = vpop.f32.mrb[0].mxu0
        %717 = vmatprep.mubr.f32.mxu0 0.0
        %718 = vmatmul.mubr.f32.gmra.mrb[0].mxu0 %v512
        %v719 = vpop.f32.mrb[0].mxu0
        %v720 = vadd.f32 %v439, %v719
        %v721 = vpop.f32.mrb[0].mxu0
        %722 = vmatprep.mubr.f32.mxu0 0.0
        %723 = vmatmul.mubr.f32.gmra.mrb[0].mxu0 %v515
        %v724 = vpop.f32.mrb[0].mxu0
        %v725 = vadd.f32 %v439, %v724
        %v726 = vpop.f32.mrb[0].mxu0
        %727 = vmatprep.mubr.f32.mxu0 0.0
        %728 = vmatmul.mubr.f32.gmra.mrb[0].mxu0 %v518
        %v729 = vpop.f32.mrb[0].mxu0
        %v730 = vadd.f32 %v439, %v729
        %v731 = vpop.f32.mrb[0].mxu0
        %732 = vmatprep.mubr.f32.mxu0 0.0
        %733 = vmatmul.mubr.f32.gmra.mrb[0].mxu0 %v521
        %v734 = vpop.f32.mrb[0].mxu0
        %v735 = vadd.f32 %v439, %v734
        %v736 = vpop.f32.mrb[0].mxu0
        %737 = vmatprep.mubr.f32.mxu0 0.0
        %738 = vmatmul.mubr.f32.gmra.mrb[0].mxu0 %v524
        %v739 = vpop.f32.mrb[0].mxu0
        %v740 = vadd.f32 %v439, %v739
        %v741 = vpop.f32.mrb[0].mxu0
        %742 = vmatprep.mubr.f32.mxu0 0.0
        %743 = vmatmul.mubr.f32.gmra.mrb[0].mxu0 %v527
        %v744 = vpop.f32.mrb[0].mxu0
        %v745 = vadd.f32 %v439, %v744
        %v746 = vpop.f32.mrb[0].mxu0
        %747 = vmatprep.mubr.f32.mxu0 0.0
        %748 = vmatmul.mubr.f32.gmra.mrb[0].mxu0 %v530
        %v749 = vpop.f32.mrb[0].mxu0
        %v750 = vadd.f32 %v439, %v749
        %v751 = vpop.f32.mrb[0].mxu0
        %752 = vmatprep.mubr.f32.mxu0 0.0
        %753 = vmatmul.mubr.f32.gmra.mrb[0].mxu0 %v533
        %v754 = vpop.f32.mrb[0].mxu0
        %v755 = vadd.f32 %v439, %v754
        %v756 = vpop.f32.mrb[0].mxu0
        %757 = vmatprep.mubr.f32.mxu0 0.0
        %758 = vmatmul.mubr.f32.gmra.mrb[0].mxu0 %v536
        %v759 = vpop.f32.mrb[0].mxu0
        %v760 = vadd.f32 %v439, %v759
        %v761 = vpop.f32.mrb[0].mxu0
        %762 = vdwg.mxu0
        %v763 = vmax.f32 %v605, 0.0
        %v764 = vmax.f32 %v610, 0.0
        %v765 = vmax.f32 %v615, 0.0
        %v766 = vmax.f32 %v620, 0.0
        %v767 = vmax.f32 %v625, 0.0
        %v768 = vmax.f32 %v630, 0.0
        %v769 = vmax.f32 %v635, 0.0
        %v770 = vmax.f32 %v640, 0.0
        %v771 = vmax.f32 %v645, 0.0
        %v772 = vmax.f32 %v650, 0.0
        %v773 = vmax.f32 %v655, 0.0
        %v774 = vmax.f32 %v660, 0.0
        %v775 = vmax.f32 %v665, 0.0
        %v776 = vmax.f32 %v670, 0.0
        %v777 = vmax.f32 %v675, 0.0
        %v778 = vmax.f32 %v680, 0.0
        %v779 = vmax.f32 %v685, 0.0
        %v780 = vmax.f32 %v690, 0.0
        %v781 = vmax.f32 %v695, 0.0
        %v782 = vmax.f32 %v700, 0.0
        %v783 = vmax.f32 %v705, 0.0
        %v784 = vmax.f32 %v710, 0.0
        %v785 = vmax.f32 %v715, 0.0
        %v786 = vmax.f32 %v720, 0.0
        %v787 = vmax.f32 %v725, 0.0
        %v788 = vmax.f32 %v730, 0.0
        %v789 = vmax.f32 %v735, 0.0
        %v790 = vmax.f32 %v740, 0.0
        %v791 = vmax.f32 %v745, 0.0
        %v792 = vmax.f32 %v750, 0.0
        %v793 = vmax.f32 %v755, 0.0
        %v794 = vmax.f32 %v760, 0.0
        %v796 = vlaneseq
        %v797 = vshrl.u32 %v796, 7
        %v798 = vsub.s32 0, %v797
        %v799 = vrot.slane %v434, %v798
        %v801 = vmul.f32 %v763, %v799
        %v802 = vmul.f32 %v764, %v799
        %v803 = vmul.f32 %v765, %v799
        %v804 = vmul.f32 %v766, %v799
        %v805 = vmul.f32 %v767, %v799
        %v806 = vmul.f32 %v768, %v799
        %v807 = vmul.f32 %v769, %v799
        %v808 = vmul.f32 %v770, %v799
        %v809 = vmul.f32 %v771, %v799
        %v810 = vmul.f32 %v772, %v799
        %v811 = vmul.f32 %v773, %v799
        %v812 = vmul.f32 %v774, %v799
        %v813 = vmul.f32 %v775, %v799
        %v814 = vmul.f32 %v776, %v799
        %v815 = vmul.f32 %v777, %v799
        %v816 = vmul.f32 %v778, %v799
        %v817 = vmul.f32 %v779, %v799
        %v818 = vmul.f32 %v780, %v799
        %v819 = vmul.f32 %v781, %v799
        %v820 = vmul.f32 %v782, %v799
        %v821 = vmul.f32 %v783, %v799
        %v822 = vmul.f32 %v784, %v799
        %v823 = vmul.f32 %v785, %v799
        %v824 = vmul.f32 %v786, %v799
        %v825 = vmul.f32 %v787, %v799
        %v826 = vmul.f32 %v788, %v799
        %v827 = vmul.f32 %v789, %v799
        %v828 = vmul.f32 %v790, %v799
        %v829 = vmul.f32 %v791, %v799
        %v830 = vmul.f32 %v792, %v799
        %v831 = vmul.f32 %v793, %v799
        %v832 = vmul.f32 %v794, %v799
        %vm833 = vcmask 523264
        %v834 = vsel %vm833, %v801, 0.0
        %835 = vadd.xlane.f32.xlu0 %v834
        %v836 = vpop.xlane.xlu0 %835
        %v837 = vsel %vm833, %v802, 0.0
        %838 = vadd.xlane.f32.xlu0 %v837
        %v839 = vpop.xlane.xlu0 %838
        %v840 = vsel %vm833, %v803, 0.0
        %841 = vadd.xlane.f32.xlu0 %v840
        %v842 = vpop.xlane.xlu0 %841
        %v843 = vsel %vm833, %v804, 0.0
        %844 = vadd.xlane.f32.xlu0 %v843
        %v845 = vpop.xlane.xlu0 %844
        %v846 = vsel %vm833, %v805, 0.0
        %847 = vadd.xlane.f32.xlu0 %v846
        %v848 = vpop.xlane.xlu0 %847
        %v849 = vsel %vm833, %v806, 0.0
        %850 = vadd.xlane.f32.xlu0 %v849
        %v851 = vpop.xlane.xlu0 %850
        %v852 = vsel %vm833, %v807, 0.0
        %853 = vadd.xlane.f32.xlu0 %v852
        %v854 = vpop.xlane.xlu0 %853
        %v855 = vsel %vm833, %v808, 0.0
        %856 = vadd.xlane.f32.xlu0 %v855
        %v857 = vpop.xlane.xlu0 %856
        %v858 = vsel %vm833, %v809, 0.0
        %859 = vadd.xlane.f32.xlu0 %v858
        %v860 = vpop.xlane.xlu0 %859
        %v861 = vsel %vm833, %v810, 0.0
        %862 = vadd.xlane.f32.xlu0 %v861
        %v863 = vpop.xlane.xlu0 %862
        %v864 = vsel %vm833, %v811, 0.0
        %865 = vadd.xlane.f32.xlu0 %v864
        %v866 = vpop.xlane.xlu0 %865
        %v867 = vsel %vm833, %v812, 0.0
        %868 = vadd.xlane.f32.xlu0 %v867
        %v869 = vpop.xlane.xlu0 %868
        %v870 = vsel %vm833, %v813, 0.0
        %871 = vadd.xlane.f32.xlu0 %v870
        %v872 = vpop.xlane.xlu0 %871
        %v873 = vsel %vm833, %v814, 0.0
        %874 = vadd.xlane.f32.xlu0 %v873
        %v875 = vpop.xlane.xlu0 %874
        %v876 = vsel %vm833, %v815, 0.0
        %877 = vadd.xlane.f32.xlu0 %v876
        %v878 = vpop.xlane.xlu0 %877
        %v879 = vsel %vm833, %v816, 0.0
        %880 = vadd.xlane.f32.xlu0 %v879
        %v881 = vpop.xlane.xlu0 %880
        %v882 = vsel %vm833, %v817, 0.0
        %883 = vadd.xlane.f32.xlu0 %v882
        %v884 = vpop.xlane.xlu0 %883
        %v885 = vsel %vm833, %v818, 0.0
        %886 = vadd.xlane.f32.xlu0 %v885
        %v887 = vpop.xlane.xlu0 %886
        %v888 = vsel %vm833, %v819, 0.0
        %889 = vadd.xlane.f32.xlu0 %v888
        %v890 = vpop.xlane.xlu0 %889
        %v891 = vsel %vm833, %v820, 0.0
        %892 = vadd.xlane.f32.xlu0 %v891
        %v893 = vpop.xlane.xlu0 %892
        %v894 = vsel %vm833, %v821, 0.0
        %895 = vadd.xlane.f32.xlu0 %v894
        %v896 = vpop.xlane.xlu0 %895
        %v897 = vsel %vm833, %v822, 0.0
        %898 = vadd.xlane.f32.xlu0 %v897
        %v899 = vpop.xlane.xlu0 %898
        %v900 = vsel %vm833, %v823, 0.0
        %901 = vadd.xlane.f32.xlu0 %v900
        %v902 = vpop.xlane.xlu0 %901
        %v903 = vsel %vm833, %v824, 0.0
        %904 = vadd.xlane.f32.xlu0 %v903
        %v905 = vpop.xlane.xlu0 %904
        %v906 = vsel %vm833, %v825, 0.0
        %907 = vadd.xlane.f32.xlu0 %v906
        %v908 = vpop.xlane.xlu0 %907
        %v909 = vsel %vm833, %v826, 0.0
        %910 = vadd.xlane.f32.xlu0 %v909
        %v911 = vpop.xlane.xlu0 %910
        %v912 = vsel %vm833, %v827, 0.0
        %913 = vadd.xlane.f32.xlu0 %v912
        %v914 = vpop.xlane.xlu0 %913
        %v915 = vsel %vm833, %v828, 0.0
        %916 = vadd.xlane.f32.xlu0 %v915
        %v917 = vpop.xlane.xlu0 %916
        %v918 = vsel %vm833, %v829, 0.0
        %919 = vadd.xlane.f32.xlu0 %v918
        %v920 = vpop.xlane.xlu0 %919
        %v921 = vsel %vm833, %v830, 0.0
        %922 = vadd.xlane.f32.xlu0 %v921
        %v923 = vpop.xlane.xlu0 %922
        %v924 = vsel %vm833, %v831, 0.0
        %925 = vadd.xlane.f32.xlu0 %v924
        %v926 = vpop.xlane.xlu0 %925
        %v927 = vsel %vm833, %v832, 0.0
        %928 = vadd.xlane.f32.xlu0 %v927
        %v929 = vpop.xlane.xlu0 %928
        %v930 = vmax.f32 %v836, %v884
        %v931 = vmax.f32 %v839, %v887
        %v932 = vmax.f32 %v842, %v890
        %v933 = vmax.f32 %v845, %v893
        %v934 = vmax.f32 %v848, %v896
        %v935 = vmax.f32 %v851, %v899
        %v936 = vmax.f32 %v854, %v902
        %v937 = vmax.f32 %v857, %v905
        %v938 = vmax.f32 %v860, %v908
        %v939 = vmax.f32 %v863, %v911
        %v940 = vmax.f32 %v866, %v914
        %v941 = vmax.f32 %v869, %v917
        %v942 = vmax.f32 %v872, %v920
        %v943 = vmax.f32 %v875, %v923
        %v944 = vmax.f32 %v878, %v926
        %v945 = vmax.f32 %v881, %v929
        %v946 = vsub.f32 %v836, %v930
        %v947 = vsub.f32 %v839, %v931
        %v948 = vsub.f32 %v842, %v932
        %v949 = vsub.f32 %v845, %v933
        %v950 = vsub.f32 %v848, %v934
        %v951 = vsub.f32 %v851, %v935
        %v952 = vsub.f32 %v854, %v936
        %v953 = vsub.f32 %v857, %v937
        %v954 = vsub.f32 %v860, %v938
        %v955 = vsub.f32 %v863, %v939
        %v956 = vsub.f32 %v866, %v940
        %v957 = vsub.f32 %v869, %v941
        %v958 = vsub.f32 %v872, %v942
        %v959 = vsub.f32 %v875, %v943
        %v960 = vsub.f32 %v878, %v944
        %v961 = vsub.f32 %v881, %v945
        %v962 = vmul.f32 %v946, 1.442695
        %v963 = vpow.pop %v962
        %v964 = vmul.f32 %v947, 1.442695
        %v965 = vpow.pop %v964
        %v966 = vmul.f32 %v948, 1.442695
        %v967 = vpow.pop %v966
        %v968 = vmul.f32 %v949, 1.442695
        %v969 = vpow.pop %v968
        %v970 = vmul.f32 %v950, 1.442695
        %v971 = vpow.pop %v970
        %v972 = vmul.f32 %v951, 1.442695
        %v973 = vpow.pop %v972
        %v974 = vmul.f32 %v952, 1.442695
        %v975 = vpow.pop %v974
        %v976 = vmul.f32 %v953, 1.442695
        %v977 = vpow.pop %v976
        %v978 = vmul.f32 %v954, 1.442695
        %v979 = vpow.pop %v978
        %v980 = vmul.f32 %v955, 1.442695
        %v981 = vpow.pop %v980
        %v982 = vmul.f32 %v956, 1.442695
        %v983 = vpow.pop %v982
        %v984 = vmul.f32 %v957, 1.442695
        %v985 = vpow.pop %v984
        %v986 = vmul.f32 %v958, 1.442695
        %v987 = vpow.pop %v986
        %v988 = vmul.f32 %v959, 1.442695
        %v989 = vpow.pop %v988
        %v990 = vmul.f32 %v960, 1.442695
        %v991 = vpow.pop %v990
        %v992 = vmul.f32 %v961, 1.442695
        %v993 = vpow.pop %v992
        %v994 = vsub.f32 %v884, %v930
        %v995 = vsub.f32 %v887, %v931
        %v996 = vsub.f32 %v890, %v932
        %v997 = vsub.f32 %v893, %v933
        %v998 = vsub.f32 %v896, %v934
        %v999 = vsub.f32 %v899, %v935
        %v1000 = vsub.f32 %v902, %v936
        %v1001 = vsub.f32 %v905, %v937
        %v1002 = vsub.f32 %v908, %v938
        %v1003 = vsub.f32 %v911, %v939
        %v1004 = vsub.f32 %v914, %v940
        %v1005 = vsub.f32 %v917, %v941
        %v1006 = vsub.f32 %v920, %v942
        %v1007 = vsub.f32 %v923, %v943
        %v1008 = vsub.f32 %v926, %v944
        %v1009 = vsub.f32 %v929, %v945
        %v1010 = vmul.f32 %v994, 1.442695
        %v1011 = vpow.pop %v1010
        %v1012 = vmul.f32 %v995, 1.442695
        %v1013 = vpow.pop %v1012
        %v1014 = vmul.f32 %v996, 1.442695
        %v1015 = vpow.pop %v1014
        %v1016 = vmul.f32 %v997, 1.442695
        %v1017 = vpow.pop %v1016
        %v1018 = vmul.f32 %v998, 1.442695
        %v1019 = vpow.pop %v1018
        %v1020 = vmul.f32 %v999, 1.442695
        %v1021 = vpow.pop %v1020
        %v1022 = vmul.f32 %v1000, 1.442695
        %v1023 = vpow.pop %v1022
        %v1024 = vmul.f32 %v1001, 1.442695
        %v1025 = vpow.pop %v1024
        %v1026 = vmul.f32 %v1002, 1.442695
        %v1027 = vpow.pop %v1026
        %v1028 = vmul.f32 %v1003, 1.442695
        %v1029 = vpow.pop %v1028
        %v1030 = vmul.f32 %v1004, 1.442695
        %v1031 = vpow.pop %v1030
        %v1032 = vmul.f32 %v1005, 1.442695
        %v1033 = vpow.pop %v1032
        %v1034 = vmul.f32 %v1006, 1.442695
        %v1035 = vpow.pop %v1034
        %v1036 = vmul.f32 %v1007, 1.442695
        %v1037 = vpow.pop %v1036
        %v1038 = vmul.f32 %v1008, 1.442695
        %v1039 = vpow.pop %v1038
        %v1040 = vmul.f32 %v1009, 1.442695
        %v1041 = vpow.pop %v1040
        %v1042 = vadd.f32 %v963, %v1011
        %v1043 = vadd.f32 %v965, %v1013
        %v1044 = vadd.f32 %v967, %v1015
        %v1045 = vadd.f32 %v969, %v1017
        %v1046 = vadd.f32 %v971, %v1019
        %v1047 = vadd.f32 %v973, %v1021
        %v1048 = vadd.f32 %v975, %v1023
        %v1049 = vadd.f32 %v977, %v1025
        %v1050 = vadd.f32 %v979, %v1027
        %v1051 = vadd.f32 %v981, %v1029
        %v1052 = vadd.f32 %v983, %v1031
        %v1053 = vadd.f32 %v985, %v1033
        %v1054 = vadd.f32 %v987, %v1035
        %v1055 = vadd.f32 %v989, %v1037
        %v1056 = vadd.f32 %v991, %v1039
        %v1057 = vadd.f32 %v993, %v1041
        %v1058 = vrcp.pop %v1042
        %v1059 = vrcp.pop %v1043
        %v1060 = vrcp.pop %v1044
        %v1061 = vrcp.pop %v1045
        %v1062 = vrcp.pop %v1046
        %v1063 = vrcp.pop %v1047
        %v1064 = vrcp.pop %v1048
        %v1065 = vrcp.pop %v1049
        %v1066 = vrcp.pop %v1050
        %v1067 = vrcp.pop %v1051
        %v1068 = vrcp.pop %v1052
        %v1069 = vrcp.pop %v1053
        %v1070 = vrcp.pop %v1054
        %v1071 = vrcp.pop %v1055
        %v1072 = vrcp.pop %v1056
        %v1073 = vrcp.pop %v1057
        %v1074 = vmul.f32 %v1042, %v1058
        %v1075 = vmul.f32 %v1043, %v1059
        %v1076 = vmul.f32 %v1044, %v1060
        %v1077 = vmul.f32 %v1045, %v1061
        %v1078 = vmul.f32 %v1046, %v1062
        %v1079 = vmul.f32 %v1047, %v1063
        %v1080 = vmul.f32 %v1048, %v1064
        %v1081 = vmul.f32 %v1049, %v1065
        %v1082 = vmul.f32 %v1050, %v1066
        %v1083 = vmul.f32 %v1051, %v1067
        %v1084 = vmul.f32 %v1052, %v1068
        %v1085 = vmul.f32 %v1053, %v1069
        %v1086 = vmul.f32 %v1054, %v1070
        %v1087 = vmul.f32 %v1055, %v1071
        %v1088 = vmul.f32 %v1056, %v1072
        %v1089 = vmul.f32 %v1057, %v1073
        %v1090 = vsub.f32 2.0, %v1074
        %v1091 = vsub.f32 2.0, %v1075
        %v1092 = vsub.f32 2.0, %v1076
        %v1093 = vsub.f32 2.0, %v1077
        %v1094 = vsub.f32 2.0, %v1078
        %v1095 = vsub.f32 2.0, %v1079
        %v1096 = vsub.f32 2.0, %v1080
        %v1097 = vsub.f32 2.0, %v1081
        %v1098 = vsub.f32 2.0, %v1082
        %v1099 = vsub.f32 2.0, %v1083
        %v1100 = vsub.f32 2.0, %v1084
        %v1101 = vsub.f32 2.0, %v1085
        %v1102 = vsub.f32 2.0, %v1086
        %v1103 = vsub.f32 2.0, %v1087
        %v1104 = vsub.f32 2.0, %v1088
        %v1105 = vsub.f32 2.0, %v1089
        %v1106 = vmul.f32 %v1058, %v1090
        %v1107 = vmul.f32 %v1059, %v1091
        %v1108 = vmul.f32 %v1060, %v1092
        %v1109 = vmul.f32 %v1061, %v1093
        %v1110 = vmul.f32 %v1062, %v1094
        %v1111 = vmul.f32 %v1063, %v1095
        %v1112 = vmul.f32 %v1064, %v1096
        %v1113 = vmul.f32 %v1065, %v1097
        %v1114 = vmul.f32 %v1066, %v1098
        %v1115 = vmul.f32 %v1067, %v1099
        %v1116 = vmul.f32 %v1068, %v1100
        %v1117 = vmul.f32 %v1069, %v1101
        %v1118 = vmul.f32 %v1070, %v1102
        %v1119 = vmul.f32 %v1071, %v1103
        %v1120 = vmul.f32 %v1072, %v1104
        %v1121 = vmul.f32 %v1073, %v1105
        %v1122 = vmul.f32 %v963, %v1106
        %v1123 = vmul.f32 %v965, %v1107
        %v1124 = vmul.f32 %v967, %v1108
        %v1125 = vmul.f32 %v969, %v1109
        %v1126 = vmul.f32 %v971, %v1110
        %v1127 = vmul.f32 %v973, %v1111
        %v1128 = vmul.f32 %v975, %v1112
        %v1129 = vmul.f32 %v977, %v1113
        %v1130 = vmul.f32 %v979, %v1114
        %v1131 = vmul.f32 %v981, %v1115
        %v1132 = vmul.f32 %v983, %v1116
        %v1133 = vmul.f32 %v985, %v1117
        %v1134 = vmul.f32 %v987, %v1118
        %v1135 = vmul.f32 %v989, %v1119
        %v1136 = vmul.f32 %v991, %v1120
        %v1137 = vmul.f32 %v993, %v1121
        %v1138 = vmul.f32 %v1011, %v1106
        %v1139 = vmul.f32 %v1013, %v1107
        %v1140 = vmul.f32 %v1015, %v1108
        %v1141 = vmul.f32 %v1017, %v1109
        %v1142 = vmul.f32 %v1019, %v1110
        %v1143 = vmul.f32 %v1021, %v1111
        %v1144 = vmul.f32 %v1023, %v1112
        %v1145 = vmul.f32 %v1025, %v1113
        %v1146 = vmul.f32 %v1027, %v1114
        %v1147 = vmul.f32 %v1029, %v1115
        %v1148 = vmul.f32 %v1031, %v1116
        %v1149 = vmul.f32 %v1033, %v1117
        %v1150 = vmul.f32 %v1035, %v1118
        %v1151 = vmul.f32 %v1037, %v1119
        %v1152 = vmul.f32 %v1039, %v1120
        %v1153 = vmul.f32 %v1041, %v1121
        %v1154 = vmul.f32 %v1122, %v397
        %v1155 = vmul.f32 %v1123, %v398
        %v1156 = vmul.f32 %v1124, %v399
        %v1157 = vmul.f32 %v1125, %v400
        %v1158 = vmul.f32 %v1126, %v401
        %v1159 = vmul.f32 %v1127, %v402
        %v1160 = vmul.f32 %v1128, %v403
        %v1161 = vmul.f32 %v1129, %v404
        %v1162 = vmul.f32 %v1130, %v405
        %v1163 = vmul.f32 %v1131, %v406
        %v1164 = vmul.f32 %v1132, %v407
        %v1165 = vmul.f32 %v1133, %v408
        %v1166 = vmul.f32 %v1134, %v409
        %v1167 = vmul.f32 %v1135, %v410
        %v1168 = vmul.f32 %v1136, %v411
        %v1169 = vmul.f32 %v1137, %v412
        %v1170 = vmul.f32 %v1138, %v413
        %v1171 = vmul.f32 %v1139, %v414
        %v1172 = vmul.f32 %v1140, %v415
        %v1173 = vmul.f32 %v1141, %v416
        %v1174 = vmul.f32 %v1142, %v417
        %v1175 = vmul.f32 %v1143, %v418
        %v1176 = vmul.f32 %v1144, %v419
        %v1177 = vmul.f32 %v1145, %v420
        %v1178 = vmul.f32 %v1146, %v421
        %v1179 = vmul.f32 %v1147, %v422
        %v1180 = vmul.f32 %v1148, %v423
        %v1181 = vmul.f32 %v1149, %v424
        %v1182 = vmul.f32 %v1150, %v425
        %v1183 = vmul.f32 %v1151, %v426
        %v1184 = vmul.f32 %v1152, %v427
        %v1185 = vmul.f32 %v1153, %v428
        %v1186 = vadd.f32 %v1154, %v1170
        %v1187 = vadd.f32 %v1155, %v1171
        %v1188 = vadd.f32 %v1156, %v1172
        %v1189 = vadd.f32 %v1157, %v1173
        %v1190 = vadd.f32 %v1158, %v1174
        %v1191 = vadd.f32 %v1159, %v1175
        %v1192 = vadd.f32 %v1160, %v1176
        %v1193 = vadd.f32 %v1161, %v1177
        %v1194 = vadd.f32 %v1162, %v1178
        %v1195 = vadd.f32 %v1163, %v1179
        %v1196 = vadd.f32 %v1164, %v1180
        %v1197 = vadd.f32 %v1165, %v1181
        %v1198 = vadd.f32 %v1166, %v1182
        %v1199 = vadd.f32 %v1167, %v1183
        %v1200 = vadd.f32 %v1168, %v1184
        %v1201 = vadd.f32 %v1169, %v1185
        %1202 = vst.msk [vmem:[%s395] sm:$0xff] %vm441, %v1186
        %1203 = vst.msk [vmem:[%s395 + $0x8] sm:$0xff] %vm441, %v1187
        %1204 = vst.msk [vmem:[%s395 + $0x10] sm:$0xff] %vm441, %v1188
        %1205 = vst.msk [vmem:[%s395 + $0x18] sm:$0xff] %vm441, %v1189
        %1206 = vst.msk [vmem:[%s395 + $0x20] sm:$0xff] %vm441, %v1190
        %1207 = vst.msk [vmem:[%s395 + $0x28] sm:$0xff] %vm441, %v1191
        %1208 = vst.msk [vmem:[%s395 + $0x30] sm:$0xff] %vm441, %v1192
        %1209 = vst.msk [vmem:[%s395 + $0x38] sm:$0xff] %vm441, %v1193
        %1210 = vst.msk [vmem:[%s395 + $0x40] sm:$0xff] %vm441, %v1194
        %1211 = vst.msk [vmem:[%s395 + $0x48] sm:$0xff] %vm441, %v1195
        %1212 = vst.msk [vmem:[%s395 + $0x50] sm:$0xff] %vm441, %v1196
        %1213 = vst.msk [vmem:[%s395 + $0x58] sm:$0xff] %vm441, %v1197
        %1214 = vst.msk [vmem:[%s395 + $0x60] sm:$0xff] %vm441, %v1198
        %1215 = vst.msk [vmem:[%s395 + $0x68] sm:$0xff] %vm441, %v1199
        %1216 = vst.msk [vmem:[%s395 + $0x70] sm:$0xff] %vm441, %v1200
        %1217 = vst.msk [vmem:[%s395 + $0x78] sm:$0xff] %vm441, %v1201
        %v1234 = vlaneseq
        %v1235 = vand.u32 %v1234, 127
        %v1236 = vlaneseq
        %v1237 = vshrl.u32 %v1236, 7
        %v1238 = vsub.s32 %v1235, %v1237
        %v1239 = vrot.slane %v1122, %v1238
        %v1240 = vadd.s32 %v1235, 4294967288
        %v1241 = vlaneseq
        %v1242 = vshrl.u32 %v1241, 7
        %v1243 = vsub.s32 %v1240, %v1242
        %v1244 = vrot.slane %v1123, %v1243
        %vm1245 = vcmask 130112
        %v1246 = vsel %vm1245, %v1244, %v1239
        %v1247 = vadd.s32 %v1235, 4294967280
        %v1248 = vlaneseq
        %v1249 = vshrl.u32 %v1248, 7
        %v1250 = vsub.s32 %v1247, %v1249
        %v1251 = vrot.slane %v1124, %v1250
        %vm1252 = vcmask 195712
        %v1253 = vsel %vm1252, %v1251, %v1246
        %v1254 = vadd.s32 %v1235, 4294967272
        %v1255 = vlaneseq
        %v1256 = vshrl.u32 %v1255, 7
        %v1257 = vsub.s32 %v1254, %v1256
        %v1258 = vrot.slane %v1125, %v1257
        %vm1259 = vcmask 261312
        %v1260 = vsel %vm1259, %v1258, %v1253
        %v1261 = vadd.s32 %v1235, 4294967264
        %v1262 = vlaneseq
        %v1263 = vshrl.u32 %v1262, 7
        %v1264 = vsub.s32 %v1261, %v1263
        %v1265 = vrot.slane %v1126, %v1264
        %vm1266 = vcmask 326912
        %v1267 = vsel %vm1266, %v1265, %v1260
        %v1268 = vadd.s32 %v1235, 4294967256
        %v1269 = vlaneseq
        %v1270 = vshrl.u32 %v1269, 7
        %v1271 = vsub.s32 %v1268, %v1270
        %v1272 = vrot.slane %v1127, %v1271
        %vm1273 = vcmask 392512
        %v1274 = vsel %vm1273, %v1272, %v1267
        %v1275 = vadd.s32 %v1235, 4294967248
        %v1276 = vlaneseq
        %v1277 = vshrl.u32 %v1276, 7
        %v1278 = vsub.s32 %v1275, %v1277
        %v1279 = vrot.slane %v1128, %v1278
        %vm1280 = vcmask 458112
        %v1281 = vsel %vm1280, %v1279, %v1274
        %v1282 = vadd.s32 %v1235, 4294967240
        %v1283 = vlaneseq
        %v1284 = vshrl.u32 %v1283, 7
        %v1285 = vsub.s32 %v1282, %v1284
        %v1286 = vrot.slane %v1129, %v1285
        %vm1287 = vcmask 523712
        %v1288 = vsel %vm1287, %v1286, %v1281
        %v1289 = vadd.s32 %v1235, 4294967232
        %v1290 = vlaneseq
        %v1291 = vshrl.u32 %v1290, 7
        %v1292 = vsub.s32 %v1289, %v1291
        %v1293 = vrot.slane %v1130, %v1292
        %vm1294 = vcmask 589312
        %v1295 = vsel %vm1294, %v1293, %v1288
        %v1296 = vadd.s32 %v1235, 4294967224
        %v1297 = vlaneseq
        %v1298 = vshrl.u32 %v1297, 7
        %v1299 = vsub.s32 %v1296, %v1298
        %v1300 = vrot.slane %v1131, %v1299
        %vm1301 = vcmask 654912
        %v1302 = vsel %vm1301, %v1300, %v1295
        %v1303 = vadd.s32 %v1235, 4294967216
        %v1304 = vlaneseq
        %v1305 = vshrl.u32 %v1304, 7
        %v1306 = vsub.s32 %v1303, %v1305
        %v1307 = vrot.slane %v1132, %v1306
        %vm1308 = vcmask 720512
        %v1309 = vsel %vm1308, %v1307, %v1302
        %v1310 = vadd.s32 %v1235, 4294967208
        %v1311 = vlaneseq
        %v1312 = vshrl.u32 %v1311, 7
        %v1313 = vsub.s32 %v1310, %v1312
        %v1314 = vrot.slane %v1133, %v1313
        %vm1315 = vcmask 786112
        %v1316 = vsel %vm1315, %v1314, %v1309
        %v1317 = vadd.s32 %v1235, 4294967200
        %v1318 = vlaneseq
        %v1319 = vshrl.u32 %v1318, 7
        %v1320 = vsub.s32 %v1317, %v1319
        %v1321 = vrot.slane %v1134, %v1320
        %vm1322 = vcmask 851712
        %v1323 = vsel %vm1322, %v1321, %v1316
        %v1324 = vadd.s32 %v1235, 4294967192
        %v1325 = vlaneseq
        %v1326 = vshrl.u32 %v1325, 7
        %v1327 = vsub.s32 %v1324, %v1326
        %v1328 = vrot.slane %v1135, %v1327
        %vm1329 = vcmask 917312
        %v1330 = vsel %vm1329, %v1328, %v1323
        %v1331 = vadd.s32 %v1235, 4294967184
        %v1332 = vlaneseq
        %v1333 = vshrl.u32 %v1332, 7
        %v1334 = vsub.s32 %v1331, %v1333
        %v1335 = vrot.slane %v1136, %v1334
        %vm1336 = vcmask 982912
        %v1337 = vsel %vm1336, %v1335, %v1330
        %v1338 = vadd.s32 %v1235, 4294967176
        %v1339 = vlaneseq
        %v1340 = vshrl.u32 %v1339, 7
        %v1341 = vsub.s32 %v1338, %v1340
        %v1342 = vrot.slane %v1137, %v1341
        %vm1343 = vcmask 1048512
        %v1344 = vsel %vm1343, %v1342, %v1337
        %v1362 = vlaneseq
        %v1363 = vshrl.u32 %v1362, 7
        %v1364 = vsub.s32 %v1235, %v1363
        %v1365 = vrot.slane %v1138, %v1364
        %v1366 = vlaneseq
        %v1367 = vshrl.u32 %v1366, 7
        %v1368 = vsub.s32 %v1240, %v1367
        %v1369 = vrot.slane %v1139, %v1368
        %v1370 = vsel %vm1245, %v1369, %v1365
        %v1371 = vlaneseq
        %v1372 = vshrl.u32 %v1371, 7
        %v1373 = vsub.s32 %v1247, %v1372
        %v1374 = vrot.slane %v1140, %v1373
        %v1375 = vsel %vm1252, %v1374, %v1370
        %v1376 = vlaneseq
        %v1377 = vshrl.u32 %v1376, 7
        %v1378 = vsub.s32 %v1254, %v1377
        %v1379 = vrot.slane %v1141, %v1378
        %v1380 = vsel %vm1259, %v1379, %v1375
        %v1381 = vlaneseq
        %v1382 = vshrl.u32 %v1381, 7
        %v1383 = vsub.s32 %v1261, %v1382
        %v1384 = vrot.slane %v1142, %v1383
        %v1385 = vsel %vm1266, %v1384, %v1380
        %v1386 = vlaneseq
        %v1387 = vshrl.u32 %v1386, 7
        %v1388 = vsub.s32 %v1268, %v1387
        %v1389 = vrot.slane %v1143, %v1388
        %v1390 = vsel %vm1273, %v1389, %v1385
        %v1391 = vlaneseq
        %v1392 = vshrl.u32 %v1391, 7
        %v1393 = vsub.s32 %v1275, %v1392
        %v1394 = vrot.slane %v1144, %v1393
        %v1395 = vsel %vm1280, %v1394, %v1390
        %v1396 = vlaneseq
        %v1397 = vshrl.u32 %v1396, 7
        %v1398 = vsub.s32 %v1282, %v1397
        %v1399 = vrot.slane %v1145, %v1398
        %v1400 = vsel %vm1287, %v1399, %v1395
        %v1401 = vlaneseq
        %v1402 = vshrl.u32 %v1401, 7
        %v1403 = vsub.s32 %v1289, %v1402
        %v1404 = vrot.slane %v1146, %v1403
        %v1405 = vsel %vm1294, %v1404, %v1400
        %v1406 = vlaneseq
        %v1407 = vshrl.u32 %v1406, 7
        %v1408 = vsub.s32 %v1296, %v1407
        %v1409 = vrot.slane %v1147, %v1408
        %v1410 = vsel %vm1301, %v1409, %v1405
        %v1411 = vlaneseq
        %v1412 = vshrl.u32 %v1411, 7
        %v1413 = vsub.s32 %v1303, %v1412
        %v1414 = vrot.slane %v1148, %v1413
        %v1415 = vsel %vm1308, %v1414, %v1410
        %v1416 = vlaneseq
        %v1417 = vshrl.u32 %v1416, 7
        %v1418 = vsub.s32 %v1310, %v1417
        %v1419 = vrot.slane %v1149, %v1418
        %v1420 = vsel %vm1315, %v1419, %v1415
        %v1421 = vlaneseq
        %v1422 = vshrl.u32 %v1421, 7
        %v1423 = vsub.s32 %v1317, %v1422
        %v1424 = vrot.slane %v1150, %v1423
        %v1425 = vsel %vm1322, %v1424, %v1420
        %v1426 = vlaneseq
        %v1427 = vshrl.u32 %v1426, 7
        %v1428 = vsub.s32 %v1324, %v1427
        %v1429 = vrot.slane %v1151, %v1428
        %v1430 = vsel %vm1329, %v1429, %v1425
        %v1431 = vlaneseq
        %v1432 = vshrl.u32 %v1431, 7
        %v1433 = vsub.s32 %v1331, %v1432
        %v1434 = vrot.slane %v1152, %v1433
        %v1435 = vsel %vm1336, %v1434, %v1430
        %v1436 = vlaneseq
        %v1437 = vshrl.u32 %v1436, 7
        %v1438 = vsub.s32 %v1338, %v1437
        %v1439 = vrot.slane %v1153, %v1438
        %v1440 = vsel %vm1343, %v1439, %v1435
        %vm1442 = vcmask 1040384
        %v1443 = vsel %vm1442, %v1344, %v1440
        %1444 = vst [vmem:[%s389] sm:$0x3] %v1443
        %s1445 = smul.u32 16, %s20
        %p1446 = scmp.lt.s32.totalorder %s1445, 79
        %s1447 = scalar_select %p1446, %s1445, 79
        %s1448 = smul.addr %s1447, 8
        %s1449 = scalar_lea.vmem %s4, %s1448
        %s1450 = sand.u32 %s143, 1
        %s1451 = scalar_lea.sflag [#allocation4], %s1450
        %s1452 = sand.u32 %s143, 1
        %s1453 = smul.addr %s1452, 2
        %s1454 = scalar_lea.vmem [#allocation3], %s1453
        // Predicated region
        $region75: #{tpu_custom_call.1} parent=69 // pred_check
          %p1455 = pneg %p127
        $region76: #{tpu_custom_call.1} parent=69 // pred_check_branch
          %1457 = sbr.rel (%p1455) target = $region78
        $region77: #{tpu_custom_call.1} parent=69 // pred_region
          %s1458 = smul.u32 16, %s20
        $region78: #{tpu_custom_call.1} parent=69 // pred_fallthru
          _
        // Predicated region
        $region79: #{tpu_custom_call.1} parent=69 // pred_check
          %p1459 = pneg %p153
        $region80: #{tpu_custom_call.1} parent=69 // pred_check_branch
          %1461 = sbr.rel (%p1459) target = $region82
        $region81: #{tpu_custom_call.1} parent=69 // pred_region
          %s1463 = ssub.s32 32, 32
          %1464 = vsyncadd %s1451, %s1463
          %s1465 = smul.addr %s20, 32
          %s1466 = scalar_lea.hbm %s5, %s1465
          %s1468 = sshll.u32 %s1454, 4
          %s1469 = int_to_ptr.vmem [resolvable:$true] %s1468
          %1471 = dma.vmem_to_hbm [thread:$0]  %s1469, 32, %s1466, %s1451
        $region82: #{tpu_custom_call.1} parent=69 // pred_fallthru
          _
      $region70: #{tpu_custom_call.1} parent=5 // pred_fallthru
        _
      %p1472 = scmp.le.s32.totalorder 2, %s15
      // Predicated region
      $region83: #{tpu_custom_call.1} parent=5 // pred_check
        %p1473 = pneg %p1472
      $region84: #{tpu_custom_call.1} parent=5 // pred_check_branch
        %1475 = sbr.rel (%p1473) target = $region86
      $region85: #{tpu_custom_call.1} parent=5 // pred_region
        %s1476 = ssub.s32 %s15, 2
        // Predicated region
        $region87: #{tpu_custom_call.1} parent=85 // pred_check
          %p1477 = pneg %p133
        $region88: #{tpu_custom_call.1} parent=85 // pred_check_branch
          %1479 = sbr.rel (%p1477) target = $region90
        $region89: #{tpu_custom_call.1} parent=85 // pred_region
          %s1480 = smul.u32 16, %s21
          %p1481 = scmp.lt.s32.totalorder %s1480, 79
          %s1482 = scalar_select %p1481, %s1480, 79
          %s1483 = smul.addr %s1482, 8
          %s1484 = scalar_lea.vmem %s4, %s1483
        $region90: #{tpu_custom_call.1} parent=85 // pred_fallthru
          _
        // Predicated region
        $region91: #{tpu_custom_call.1} parent=85 // pred_check
          %p1485 = pneg %p159
        $region92: #{tpu_custom_call.1} parent=85 // pred_check_branch
          %1487 = sbr.rel (%p1485) target = $region94
        $region93: #{tpu_custom_call.1} parent=85 // pred_region
          %s1488 = sand.u32 %s144, 1
          %s1489 = scalar_lea.sflag [#allocation4], %s1488
          %s1490 = sand.u32 %s144, 1
          %s1491 = smul.addr %s1490, 2
          %s1492 = scalar_lea.vmem [#allocation3], %s1491
          %1493 = dma.done %s1489, 32
        $region94: #{tpu_custom_call.1} parent=85 // pred_fallthru
          _
      $region86: #{tpu_custom_call.1} parent=5 // pred_fallthru
        _
    $region6: #{tpu_custom_call.1} parent=1 // loop_footer
      %s19 = sadd.s32 1, %s15
    $region7: #{tpu_custom_call.1} parent=1 // loop_footer_branch
      %14 = sbr.rel target = $region3
    $region8: #{tpu_custom_call.1} parent=1 // loop_exit
      _
    %1494 = vsyncpa [#allocation4], 1
    %s1495 = scalar_lea.sflag [#allocation4], 1
    %1496 = vsyncpa %s1495, 1

</llo_original>
